<compile_context>
chip_gen: v7x
topology: tpu7x:2x2x1
jax: 0.10.0
libtpu: 0.0.40
codegen_flags: <defaults>
</compile_context>

<pallas_src>
import jax
import jax.numpy as jnp
from jax.experimental import pallas as pl
from jax.experimental.pallas import tpu as pltpu


def _round_up(x, m):
    return ((x + m - 1) // m) * m


def _fusion_kernel(img_ref, aud_ref,
                   wi_ref, bi_ref,
                   wa_ref, ba_ref,
                   wo_ref, bo_ref,
                   out_ref):
    # bf16 operands (pre-cast in the wrapper) on the MXU, fp32 accumulation.
    img_p = jnp.dot(img_ref[...], wi_ref[...],
                    preferred_element_type=jnp.float32) + bi_ref[...]
    aud_p = jnp.dot(aud_ref[...], wa_ref[...],
                    preferred_element_type=jnp.float32) + ba_ref[...]
    # Elementwise product + bias adds in fp32 (VPU), cast for the final MXU op.
    fused = (img_p * aud_p).astype(jnp.bfloat16)
    out = jnp.dot(fused, wo_ref[...],
                  preferred_element_type=jnp.float32) + bo_ref[...]
    out_ref[...] = out.astype(out_ref.dtype)


def factorized_bilinear_fusion(image_features, audio_features, params,
                               *, block_m=None, block_n=None):
    """Fused forward pass of FactorizedBilinearFusion.

    params: dict with
      w_img (img_dim, hidden), b_img (1, hidden)
      w_aud (aud_dim, hidden), b_aud (1, hidden)
      w_out (hidden, output),  b_out (1, output)
    Weights are stored (in, out) so the kernel computes x @ W + b
    (== PyTorch Linear's x @ W.T + b).
    """
    B, img_dim = image_features.shape
    _, aud_dim = audio_features.shape
    hidden = params["w_img"].shape[1]
    out_dim = params["w_out"].shape[1]
    out_dtype = image_features.dtype

    # ---- Lane-dense padded feature dims ---------------------------------
    hidden_pad = _round_up(hidden, 128)
    out_pad = _round_up(out_dim, 128)

    # ---- Batch tile ------------------------------------------------------
    if block_m is None:
        if B >= 512:
            block_m = 256            # amortize per-step overhead (v6e/v7x)
        elif B >= 128:
            block_m = 128
        else:
            block_m = _round_up(max(B, 1), 8)
    b_pad = _round_up(B, block_m)
    num_m = b_pad // block_m

    # ---- Generation-aware VMEM budget ------------------------------------
    try:
        phys_vmem = int(pltpu.get_tpu_info().vmem_capacity_bytes)
    except Exception:
        phys_vmem = 64 * 1024 * 1024          # conservative (v7x per-core)
    vmem_cap = max(phys_vmem - 16 * 1024 * 1024, 32 * 1024 * 1024)

    BF16, F32 = 2, 4

    def resident_weight_bytes(tn):
        # bf16 W_img + W_aud (pinned) + one W_out tile, plus fp32 biases.
        return (BF16 * (img_dim * hidden_pad + aud_dim * hidden_pad
                        + hidden_pad * tn)
                + F32 * (2 * hidden_pad + tn))

    # ---- Output tile: bound resident VMEM, keep >=2 parallel steps -------
    if block_n is None:
        cands = [c for c in range(128, out_pad + 1, 128) if out_pad % c == 0]
        budget = vmem_cap // 2
        block_n = cands[0]
        for c in reversed(cands):
            if resident_weight_bytes(c) <= budget:
                block_n = c
                break
        # v7x: with a single batch tile, split the out axis so both
        # TensorCores get work (no effect on single-TC v5e/v6e).
        if num_m == 1 and block_n == out_pad:
            smaller = [c for c in cands if c < out_pad]
            if smaller:
                block_n = smaller[-1]
    num_n = out_pad // block_n

    # ---- Pad + pre-cast operands (weights -> bf16, once, in HBM) ----------
    def pad2(a, rows, cols):
        r, c = a.shape
        if r == rows and c == cols:
            return a
        return jnp.pad(a, ((0, rows - r), (0, cols - c)))

    w_img = pad2(params["w_img"], img_dim, hidden_pad).astype(jnp.bfloat16)
    w_aud = pad2(params["w_aud"], aud_dim, hidden_pad).astype(jnp.bfloat16)
    w_out = pad2(params["w_out"], hidden_pad, out_pad).astype(jnp.bfloat16)
    b_img = pad2(params["b_img"].reshape(1, -1), 1, hidden_pad).astype(jnp.float32)
    b_aud = pad2(params["b_aud"].reshape(1, -1), 1, hidden_pad).astype(jnp.float32)
    b_out = pad2(params["b_out"].reshape(1, -1), 1, out_pad).astype(jnp.float32)

    img = image_features.astype(jnp.bfloat16)
    aud = audio_features.astype(jnp.bfloat16)
    if b_pad != B:
        img = jnp.pad(img, ((0, b_pad - B), (0, 0)))
        aud = jnp.pad(aud, ((0, b_pad - B), (0, 0)))

    # ---- VMEM limit (with headroom, never the full physical size) ---------
    needed = (
        # double-buffered bf16 activation tiles + fp32 output tile
        2 * block_m * (img_dim + aud_dim) * BF16
        + 2 * block_m * block_n * F32
        # resident weights/biases (counted 2x to cover the double-buffer
        # fallback path)
        + 2 * resident_weight_bytes(block_n)
        # fp32 intermediates (img_p, aud_p, fused, out)
        + 3 * block_m * hidden_pad * F32 + block_m * block_n * F32
    )
    vmem_limit = int(min(max(2 * needed, 32 * 1024 * 1024), vmem_cap))

    # ---- Advisory cost estimate (real itemsizes) --------------------------
    out_isz = jnp.dtype(out_dtype).itemsize
    flops = int(2 * b_pad * num_n * (img_dim + aud_dim) * hidden_pad
                + 2 * b_pad * hidden_pad * out_pad)
    bytes_accessed = int(
        b_pad * (img_dim + aud_dim) * BF16            # activations (bf16)
        + (img_dim + aud_dim) * hidden_pad * BF16     # proj weights (bf16)
        + hidden_pad * out_pad * BF16                 # output weight (bf16)
        + (2 * hidden_pad + out_pad) * F32            # biases (fp32)
        + b_pad * out_pad * out_isz                   # output
    )

    def _build_specs(pinned_mode):
        # W_out / b_out only qualify for single-buffering when they never
        # change across the grid (num_n == 1).
        wo_mode = pinned_mode if num_n == 1 else None
        in_specs = [
            # activations: tiled over batch, pipelined/double-buffered
            pl.BlockSpec((block_m, img_dim), lambda i, j: (i, 0)),
            pl.BlockSpec((block_m, aud_dim), lambda i, j: (i, 0)),
            # pinned, resident projection weights / biases
            pl.BlockSpec((img_dim, hidden_pad), lambda i, j: (0, 0),
                         pipeline_mode=pinned_mode),
            pl.BlockSpec((1, hidden_pad), lambda i, j: (0, 0),
                         pipeline_mode=pinned_mode),
            pl.BlockSpec((aud_dim, hidden_pad), lambda i, j: (0, 0),
                         pipeline_mode=pinned_mode),
            pl.BlockSpec((1, hidden_pad), lambda i, j: (0, 0),
                         pipeline_mode=pinned_mode),
            # output projection: tiled along the out axis
            pl.BlockSpec((hidden_pad, block_n), lambda i, j: (0, j),
                         pipeline_mode=wo_mode),
            pl.BlockSpec((1, block_n), lambda i, j: (0, j),
                         pipeline_mode=wo_mode),
        ]
        out_specs = pl.BlockSpec((block_m, block_n), lambda i, j: (i, j))
        return in_specs, out_specs

    def _run(single_buffer_pinned):
        mode = pl.Buffered(buffer_count=1) if single_buffer_pinned else None
        in_specs, out_specs = _build_specs(mode)
        return pl.pallas_call(
            _fusion_kernel,
            out_shape=jax.ShapeDtypeStruct((b_pad, out_pad), out_dtype),
            grid=(num_m, num_n),
            in_specs=in_specs,
            out_specs=out_specs,
            compiler_params=pltpu.CompilerParams(
                dimension_semantics=("parallel", "parallel"),
                vmem_limit_bytes=vmem_limit,
            ),
            cost_estimate=pl.CostEstimate(
                flops=flops,
                transcendentals=0,
                bytes_accessed=bytes_accessed,
            ),
        )(img, aud, w_img, b_img, w_aud, b_aud, w_out, b_out)

    try:
        out = _run(True)
    except Exception:
        # Fallback if this jax version rejects 1-deep buffering; only cost is
        # one extra (never refilled) weight buffer in VMEM.
        out = _run(False)

    return out[:B, :out_dim]


def init_params(key, img_dim, aud_dim, hidden_dim, output_dim,
                dtype=jnp.float32):
    """PyTorch-Linear-style uniform init; weights stored (in, out)."""
    ks = jax.random.split(key, 6)

    def linear(kw, kb, fan_in, fan_out):
        bound = 1.0 / float(fan_in) ** 0.5
        w = jax.random.uniform(kw, (fan_in, fan_out), dtype, -bound, bound)
        b = jax.random.uniform(kb, (1, fan_out), dtype, -bound, bound)
        return w, b

    w_img, b_img = linear(ks[0], ks[1], img_dim, hidden_dim)
    w_aud, b_aud = linear(ks[2], ks[3], aud_dim, hidden_dim)
    w_out, b_out = linear(ks[4], ks[5], hidden_dim, output_dim)
    return {
        "w_img": w_img, "b_img": b_img,
        "w_aud": w_aud, "b_aud": b_aud,
        "w_out": w_out, "b_out": b_out,
    }


def reference_forward(image_features, audio_features, params):
    """Pure-JAX fp32 reference matching the PyTorch module semantics."""
    img_p = image_features @ params["w_img"] + params["b_img"]
    aud_p = audio_features @ params["w_aud"] + params["b_aud"]
    fused = img_p * aud_p
    return fused @ params["w_out"] + params["b_out"]


if __name__ == "__main__":
    # Small shapes consistent with the module's example usage.
    B = 2
    IMG_DIM = 128
    AUD_DIM = 128
    HIDDEN_DIM = 64      # padded to 128 inside the wrapper for lane density
    OUTPUT_DIM = 256

    key = jax.random.PRNGKey(0)
    k_img, k_aud, k_params = jax.random.split(key, 3)

    image_features = jax.random.normal(k_img, (B, IMG_DIM), jnp.float32)
    audio_features = jax.random.normal(k_aud, (B, AUD_DIM), jnp.float32)
    params = init_params(k_params, IMG_DIM, AUD_DIM, HIDDEN_DIM, OUTPUT_DIM)

    out = factorized_bilinear_fusion(image_features, audio_features, params)
    out = jax.block_until_ready(out)

    ref = reference_forward(image_features, audio_features, params)
    assert out.shape == (B, OUTPUT_DIM), out.shape
    # Tolerance accounts for intentional bf16 matmul operands (fp32 accum).
    assert jnp.allclose(out, ref, atol=2e-2, rtol=2e-2), \
        float(jnp.max(jnp.abs(out - ref)))

    print("KERNEL_OK")
</pallas_src>

<mosaic_0001>
module attributes {stable_mosaic.version = 11 : i64} {
  func.func @_fusion_kernel(%arg0: i32, %arg1: i32, %arg2: memref<8x128xbf16, #tpu.memory_space<vmem>>, %arg3: memref<8x128xbf16, #tpu.memory_space<vmem>>, %arg4: memref<128x128xbf16, #tpu.memory_space<vmem>>, %arg5: memref<1x128xf32, #tpu.memory_space<vmem>>, %arg6: memref<128x128xbf16, #tpu.memory_space<vmem>>, %arg7: memref<1x128xf32, #tpu.memory_space<vmem>>, %arg8: memref<128x128xbf16, #tpu.memory_space<vmem>>, %arg9: memref<1x128xf32, #tpu.memory_space<vmem>>, %arg10: memref<8x128xf32, #tpu.memory_space<vmem>>) attributes {dimension_semantics = [#tpu.dimension_semantics<parallel>, #tpu.dimension_semantics<parallel>], iteration_bounds = array<i64: 1, 2>, scalar_prefetch = 0 : i64, scratch_operands = 0 : i64, tpu.core_type = #tpu.core_type<tc>, window_params = [{transform_indices = @transform_0, window_bounds = array<i64: 8, 128>}, {transform_indices = @transform_1, window_bounds = array<i64: 8, 128>}, {pipeline_mode = #tpu.pipeline_mode<synchronous>, transform_indices = @transform_2, window_bounds = array<i64: 128, 128>}, {pipeline_mode = #tpu.pipeline_mode<synchronous>, transform_indices = @transform_3, window_bounds = array<i64: 1, 128>}, {pipeline_mode = #tpu.pipeline_mode<synchronous>, transform_indices = @transform_4, window_bounds = array<i64: 128, 128>}, {pipeline_mode = #tpu.pipeline_mode<synchronous>, transform_indices = @transform_5, window_bounds = array<i64: 1, 128>}, {transform_indices = @transform_6, window_bounds = array<i64: 128, 128>}, {transform_indices = @transform_7, window_bounds = array<i64: 1, 128>}, {transform_indices = @transform_8, window_bounds = array<i64: 8, 128>}]} {
    %c0 = arith.constant 0 : index
    %c0_0 = arith.constant 0 : index
    %0 = vector.load %arg2[%c0, %c0_0] : memref<8x128xbf16, #tpu.memory_space<vmem>>, vector<8x128xbf16>
    %c0_1 = arith.constant 0 : index
    %c0_2 = arith.constant 0 : index
    %1 = vector.load %arg4[%c0_1, %c0_2] : memref<128x128xbf16, #tpu.memory_space<vmem>>, vector<128x128xbf16>
    %cst = arith.constant dense<0.000000e+00> : vector<8x128xf32>
    %2 = tpu.matmul %0, %1, %cst {dimension_numbers = #tpu.dot_dimension_numbers<[1], [0], [0], [1], [0, 0, 1, 1], [], []>} : vector<8x128xbf16>, vector<128x128xbf16>, vector<8x128xf32> -> vector<8x128xf32>
    %c0_3 = arith.constant 0 : index
    %c0_4 = arith.constant 0 : index
    %3 = vector.load %arg5[%c0_3, %c0_4] : memref<1x128xf32, #tpu.memory_space<vmem>>, vector<1x128xf32>
    %4 = vector.broadcast %3 : vector<1x128xf32> to vector<8x128xf32>
    %5 = arith.addf %2, %4 : vector<8x128xf32>
    %c0_5 = arith.constant 0 : index
    %c0_6 = arith.constant 0 : index
    %6 = vector.load %arg3[%c0_5, %c0_6] : memref<8x128xbf16, #tpu.memory_space<vmem>>, vector<8x128xbf16>
    %c0_7 = arith.constant 0 : index
    %c0_8 = arith.constant 0 : index
    %7 = vector.load %arg6[%c0_7, %c0_8] : memref<128x128xbf16, #tpu.memory_space<vmem>>, vector<128x128xbf16>
    %cst_9 = arith.constant dense<0.000000e+00> : vector<8x128xf32>
    %8 = tpu.matmul %6, %7, %cst_9 {dimension_numbers = #tpu.dot_dimension_numbers<[1], [0], [0], [1], [0, 0, 1, 1], [], []>} : vector<8x128xbf16>, vector<128x128xbf16>, vector<8x128xf32> -> vector<8x128xf32>
    %c0_10 = arith.constant 0 : index
    %c0_11 = arith.constant 0 : index
    %9 = vector.load %arg7[%c0_10, %c0_11] : memref<1x128xf32, #tpu.memory_space<vmem>>, vector<1x128xf32>
    %10 = vector.broadcast %9 : vector<1x128xf32> to vector<8x128xf32>
    %11 = arith.addf %8, %10 : vector<8x128xf32>
    %12 = arith.mulf %5, %11 : vector<8x128xf32>
    %13 = arith.truncf %12 : vector<8x128xf32> to vector<8x128xbf16>
    %c0_12 = arith.constant 0 : index
    %c0_13 = arith.constant 0 : index
    %14 = vector.load %arg8[%c0_12, %c0_13] : memref<128x128xbf16, #tpu.memory_space<vmem>>, vector<128x128xbf16>
    %cst_14 = arith.constant dense<0.000000e+00> : vector<8x128xf32>
    %15 = tpu.matmul %13, %14, %cst_14 {dimension_numbers = #tpu.dot_dimension_numbers<[1], [0], [0], [1], [0, 0, 1, 1], [], []>} : vector<8x128xbf16>, vector<128x128xbf16>, vector<8x128xf32> -> vector<8x128xf32>
    %c0_15 = arith.constant 0 : index
    %c0_16 = arith.constant 0 : index
    %16 = vector.load %arg9[%c0_15, %c0_16] : memref<1x128xf32, #tpu.memory_space<vmem>>, vector<1x128xf32>
    %17 = vector.broadcast %16 : vector<1x128xf32> to vector<8x128xf32>
    %18 = arith.addf %15, %17 : vector<8x128xf32>
    %c0_17 = arith.constant 0 : index
    %c0_18 = arith.constant 0 : index
    %19 = vector.load %arg10[%c0_17, %c0_18] : memref<8x128xf32, #tpu.memory_space<vmem>>, vector<8x128xf32>
    tpu.vector_store %arg10[%c0_17, %c0_18], %18 {strides = array<i32>} : memref<8x128xf32, #tpu.memory_space<vmem>>, vector<8x128xf32>,
    return
  }
  func.func @transform_0(%arg0: i32, %arg1: i32) -> (i32, i32) {
    %c0_i32 = arith.constant 0 : i32
    %c0_i32_0 = arith.constant 0 : i32
    return %arg0, %c0_i32 : i32, i32
  }
  func.func @transform_1(%arg0: i32, %arg1: i32) -> (i32, i32) {
    %c0_i32 = arith.constant 0 : i32
    %c0_i32_0 = arith.constant 0 : i32
    return %arg0, %c0_i32 : i32, i32
  }
  func.func @transform_2(%arg0: i32, %arg1: i32) -> (i32, i32) {
    %c0_i32 = arith.constant 0 : i32
    %c0_i32_0 = arith.constant 0 : i32
    %c0_i32_1 = arith.constant 0 : i32
    return %c0_i32, %c0_i32_0 : i32, i32
  }
  func.func @transform_3(%arg0: i32, %arg1: i32) -> (i32, i32) {
    %c0_i32 = arith.constant 0 : i32
    %c0_i32_0 = arith.constant 0 : i32
    %c0_i32_1 = arith.constant 0 : i32
    return %c0_i32, %c0_i32_0 : i32, i32
  }
  func.func @transform_4(%arg0: i32, %arg1: i32) -> (i32, i32) {
    %c0_i32 = arith.constant 0 : i32
    %c0_i32_0 = arith.constant 0 : i32
    %c0_i32_1 = arith.constant 0 : i32
    return %c0_i32, %c0_i32_0 : i32, i32
  }
  func.func @transform_5(%arg0: i32, %arg1: i32) -> (i32, i32) {
    %c0_i32 = arith.constant 0 : i32
    %c0_i32_0 = arith.constant 0 : i32
    %c0_i32_1 = arith.constant 0 : i32
    return %c0_i32, %c0_i32_0 : i32, i32
  }
  func.func @transform_6(%arg0: i32, %arg1: i32) -> (i32, i32) {
    %c0_i32 = arith.constant 0 : i32
    %c0_i32_0 = arith.constant 0 : i32
    return %c0_i32, %arg1 : i32, i32
  }
  func.func @transform_7(%arg0: i32, %arg1: i32) -> (i32, i32) {
    %c0_i32 = arith.constant 0 : i32
    %c0_i32_0 = arith.constant 0 : i32
    return %c0_i32, %arg1 : i32, i32
  }
  func.func @transform_8(%arg0: i32, %arg1: i32) -> (i32, i32) {
    %c0_i32 = arith.constant 0 : i32
    return %arg0, %arg1 : i32, i32
  }
}

module attributes {stable_mosaic.version = 11 : i64} {
  func.func @_fusion_kernel(%arg0: i32, %arg1: i32, %arg2: memref<8x128xbf16, #tpu.memory_space<vmem>>, %arg3: memref<8x128xbf16, #tpu.memory_space<vmem>>, %arg4: memref<128x128xbf16, #tpu.memory_space<vmem>>, %arg5: memref<1x128xf32, #tpu.memory_space<vmem>>, %arg6: memref<128x128xbf16, #tpu.memory_space<vmem>>, %arg7: memref<1x128xf32, #tpu.memory_space<vmem>>, %arg8: memref<128x128xbf16, #tpu.memory_space<vmem>>, %arg9: memref<1x128xf32, #tpu.memory_space<vmem>>, %arg10: memref<8x128xf32, #tpu.memory_space<vmem>>) attributes {dimension_semantics = [#tpu.dimension_semantics<parallel>, #tpu.dimension_semantics<parallel>], iteration_bounds = array<i64: 1, 2>, scalar_prefetch = 0 : i64, scratch_operands = 0 : i64, tpu.core_type = #tpu.core_type<tc>, window_params = [{transform_indices = @transform_0, window_bounds = array<i64: 8, 128>}, {transform_indices = @transform_1, window_bounds = array<i64: 8, 128>}, {pipeline_mode = #tpu.pipeline_mode<synchronous>, transform_indices = @transform_2, window_bounds = array<i64: 128, 128>}, {pipeline_mode = #tpu.pipeline_mode<synchronous>, transform_indices = @transform_3, window_bounds = array<i64: 1, 128>}, {pipeline_mode = #tpu.pipeline_mode<synchronous>, transform_indices = @transform_4, window_bounds = array<i64: 128, 128>}, {pipeline_mode = #tpu.pipeline_mode<synchronous>, transform_indices = @transform_5, window_bounds = array<i64: 1, 128>}, {transform_indices = @transform_6, window_bounds = array<i64: 128, 128>}, {transform_indices = @transform_7, window_bounds = array<i64: 1, 128>}, {transform_indices = @transform_8, window_bounds = array<i64: 8, 128>}]} {
    %c0 = arith.constant 0 : index
    %c0_0 = arith.constant 0 : index
    %0 = vector.load %arg2[%c0, %c0_0] : memref<8x128xbf16, #tpu.memory_space<vmem>>, vector<8x128xbf16>
    %c0_1 = arith.constant 0 : index
    %c0_2 = arith.constant 0 : index
    %1 = vector.load %arg4[%c0_1, %c0_2] : memref<128x128xbf16, #tpu.memory_space<vmem>>, vector<128x128xbf16>
    %cst = arith.constant dense<0.000000e+00> : vector<8x128xf32>
    %2 = tpu.matmul %0, %1, %cst {dimension_numbers = #tpu.dot_dimension_numbers<[1], [0], [0], [1], [0, 0, 1, 1], [], []>} : vector<8x128xbf16>, vector<128x128xbf16>, vector<8x128xf32> -> vector<8x128xf32>
    %c0_3 = arith.constant 0 : index
    %c0_4 = arith.constant 0 : index
    %3 = vector.load %arg5[%c0_3, %c0_4] : memref<1x128xf32, #tpu.memory_space<vmem>>, vector<1x128xf32>
    %4 = vector.broadcast %3 : vector<1x128xf32> to vector<8x128xf32>
    %5 = arith.addf %2, %4 : vector<8x128xf32>
    %c0_5 = arith.constant 0 : index
    %c0_6 = arith.constant 0 : index
    %6 = vector.load %arg3[%c0_5, %c0_6] : memref<8x128xbf16, #tpu.memory_space<vmem>>, vector<8x128xbf16>
    %c0_7 = arith.constant 0 : index
    %c0_8 = arith.constant 0 : index
    %7 = vector.load %arg6[%c0_7, %c0_8] : memref<128x128xbf16, #tpu.memory_space<vmem>>, vector<128x128xbf16>
    %cst_9 = arith.constant dense<0.000000e+00> : vector<8x128xf32>
    %8 = tpu.matmul %6, %7, %cst_9 {dimension_numbers = #tpu.dot_dimension_numbers<[1], [0], [0], [1], [0, 0, 1, 1], [], []>} : vector<8x128xbf16>, vector<128x128xbf16>, vector<8x128xf32> -> vector<8x128xf32>
    %c0_10 = arith.constant 0 : index
    %c0_11 = arith.constant 0 : index
    %9 = vector.load %arg7[%c0_10, %c0_11] : memref<1x128xf32, #tpu.memory_space<vmem>>, vector<1x128xf32>
    %10 = vector.broadcast %9 : vector<1x128xf32> to vector<8x128xf32>
    %11 = arith.addf %8, %10 : vector<8x128xf32>
    %12 = arith.mulf %5, %11 : vector<8x128xf32>
    %13 = arith.truncf %12 : vector<8x128xf32> to vector<8x128xbf16>
    %c0_12 = arith.constant 0 : index
    %c0_13 = arith.constant 0 : index
    %14 = vector.load %arg8[%c0_12, %c0_13] : memref<128x128xbf16, #tpu.memory_space<vmem>>, vector<128x128xbf16>
    %cst_14 = arith.constant dense<0.000000e+00> : vector<8x128xf32>
    %15 = tpu.matmul %13, %14, %cst_14 {dimension_numbers = #tpu.dot_dimension_numbers<[1], [0], [0], [1], [0, 0, 1, 1], [], []>} : vector<8x128xbf16>, vector<128x128xbf16>, vector<8x128xf32> -> vector<8x128xf32>
    %c0_15 = arith.constant 0 : index
    %c0_16 = arith.constant 0 : index
    %16 = vector.load %arg9[%c0_15, %c0_16] : memref<1x128xf32, #tpu.memory_space<vmem>>, vector<1x128xf32>
    %17 = vector.broadcast %16 : vector<1x128xf32> to vector<8x128xf32>
    %18 = arith.addf %15, %17 : vector<8x128xf32>
    %c0_17 = arith.constant 0 : index
    %c0_18 = arith.constant 0 : index
    %19 = vector.load %arg10[%c0_17, %c0_18] : memref<8x128xf32, #tpu.memory_space<vmem>>, vector<8x128xf32>
    tpu.vector_store %arg10[%c0_17, %c0_18], %18 {strides = array<i32>} : memref<8x128xf32, #tpu.memory_space<vmem>>, vector<8x128xf32>,
    return
  }
  func.func @transform_0(%arg0: i32, %arg1: i32) -> (i32, i32) {
    %c0_i32 = arith.constant 0 : i32
    %c0_i32_0 = arith.constant 0 : i32
    return %arg0, %c0_i32 : i32, i32
  }
  func.func @transform_1(%arg0: i32, %arg1: i32) -> (i32, i32) {
    %c0_i32 = arith.constant 0 : i32
    %c0_i32_0 = arith.constant 0 : i32
    return %arg0, %c0_i32 : i32, i32
  }
  func.func @transform_2(%arg0: i32, %arg1: i32) -> (i32, i32) {
    %c0_i32 = arith.constant 0 : i32
    %c0_i32_0 = arith.constant 0 : i32
    %c0_i32_1 = arith.constant 0 : i32
    return %c0_i32, %c0_i32_0 : i32, i32
  }
  func.func @transform_3(%arg0: i32, %arg1: i32) -> (i32, i32) {
    %c0_i32 = arith.constant 0 : i32
    %c0_i32_0 = arith.constant 0 : i32
    %c0_i32_1 = arith.constant 0 : i32
    return %c0_i32, %c0_i32_0 : i32, i32
  }
  func.func @transform_4(%arg0: i32, %arg1: i32) -> (i32, i32) {
    %c0_i32 = arith.constant 0 : i32
    %c0_i32_0 = arith.constant 0 : i32
    %c0_i32_1 = arith.constant 0 : i32
    return %c0_i32, %c0_i32_0 : i32, i32
  }
  func.func @transform_5(%arg0: i32, %arg1: i32) -> (i32, i32) {
    %c0_i32 = arith.constant 0 : i32
    %c0_i32_0 = arith.constant 0 : i32
    %c0_i32_1 = arith.constant 0 : i32
    return %c0_i32, %c0_i32_0 : i32, i32
  }
  func.func @transform_6(%arg0: i32, %arg1: i32) -> (i32, i32) {
    %c0_i32 = arith.constant 0 : i32
    %c0_i32_0 = arith.constant 0 : i32
    return %c0_i32, %arg1 : i32, i32
  }
  func.func @transform_7(%arg0: i32, %arg1: i32) -> (i32, i32) {
    %c0_i32 = arith.constant 0 : i32
    %c0_i32_0 = arith.constant 0 : i32
    return %c0_i32, %arg1 : i32, i32
  }
  func.func @transform_8(%arg0: i32, %arg1: i32) -> (i32, i32) {
    %c0_i32 = arith.constant 0 : i32
    return %arg0, %arg1 : i32, i32
  }
}

</mosaic_0001>

<llo_original>
// kernel: tpu_custom_call.1
$region0: #{tpu_custom_call.1}
  #allocation0 [shape = 'u32[]', space=smem, size = 0x4, offset = 0x4, fixed_abs, tag = 'smem constant byte address 0x4 - core index']
  #allocation1 [shape = 'u32[144,128]{1,0:T(1,128)}', space=vmem, size = 0x12000, scoped, tag = 'internal scratch']
  %s0 = inlined_call_operand.hbm [shape: bf16[8,128], index: 0, kind: input, shape index: {}]
  %s1 = inlined_call_operand.hbm [shape: bf16[8,128], index: 1, kind: input, shape index: {}]
  %s2 = inlined_call_operand.hbm [shape: bf16[128,128], index: 2, kind: input, shape index: {}]
  %s3 = inlined_call_operand.vmem [shape: f32[1,128], index: 3, kind: input, shape index: {}]
  %s4 = inlined_call_operand.hbm [shape: bf16[128,128], index: 4, kind: input, shape index: {}]
  %s5 = inlined_call_operand.vmem [shape: f32[1,128], index: 5, kind: input, shape index: {}]
  %s6 = inlined_call_operand.hbm [shape: bf16[128,256], index: 6, kind: input, shape index: {}]
  %s7 = inlined_call_operand.vmem [shape: f32[1,256], index: 7, kind: input, shape index: {}]
  %s8 = inlined_call_operand.hbm [shape: f32[8,256], index: 8, kind: output, shape index: {}]
  %s9 = sld [smem:[#allocation0]]
  $region85: #{tpu_custom_call.1} parent=0
    _
  %s11 = ssub.s32 1, %s9
  %s12 = scalar_select 0, %s11, %s9
  $region1: #{tpu_custom_call.1} parent=0
    #allocation2 [shape = 'u8[2048]{0}', space=vmem, size = 0x800, scoped, tag = 'input window, operand 0, single buffered']
    #allocation3 [shape = 's32[2]{0}', space=sflag, size = 0x8, scoped, tag = 'scoped memory for tpu_custom_call.1']
    #allocation4 [shape = 's32[2]{0}', space=sflag, size = 0x8, scoped, tag = 'scoped memory for tpu_custom_call.1']
    #allocation5 [shape = 'u8[2048]{0}', space=vmem, size = 0x800, scoped, tag = 'input window, operand 1, single buffered']
    #allocation6 [shape = 's32[1]{0}', space=sflag, size = 0x4, scoped, tag = 'scoped memory for tpu_custom_call.1']
    #allocation7 [shape = 'u8[32768]{0}', space=vmem, size = 0x8000, scoped, tag = 'input window, operand 2, single buffered']
    #allocation8 [shape = 'u8[32768]{0}', space=vmem, size = 0x8000, scoped, tag = 'input window, operand 4, single buffered']
    #allocation9 [shape = 's32[1]{0}', space=sflag, size = 0x4, scoped, tag = 'scoped memory for tpu_custom_call.1']
    #allocation10 [shape = 'u8[65536]{0}', space=vmem, size = 0x10000, scoped, tag = 'input window, operand 6']
    #allocation11 [shape = 'u8[8192]{0}', space=vmem, size = 0x2000, scoped, tag = 'output window, operand 0']
    %13 = vsyncpa [#allocation3], 0
    %14 = vsyncpa [#allocation6], 0
    %15 = vsyncpa [#allocation9], 0
    %16 = vsyncpa [#allocation4], 0
    %s17 = scalar_lea.sflag [#allocation4], 1
    %18 = vsyncpa %s17, 0
    loop: start=0, step=1, limit=4
    $region2: #{tpu_custom_call.1} parent=1 // loop_pre_header
      _
    $region3: #{tpu_custom_call.1} parent=1 // loop_header
      %s20 = sphi 0, %s24
      %p21 = scmp.ge.s32.totalorder %s20, 4
      %s27 = sphi 0, %s39
      %s28 = sphi 0, %s35
      %s29 = sphi 0, %s27
      %s30 = sphi 0, %s28
      %s31 = sphi 0, %s29
      %s32 = sphi 0, %s30
      %s42 = sphi 0, %s44
      %s45 = sphi 0, %s42
      %s46 = sphi 0, %s45
      %s62 = sphi 0, %s46
      %s68 = sphi 0, %s70
      %s71 = sphi 0, %s68
      %s72 = sphi 0, %s71
      %s88 = sphi 0, %s72
      %s92 = sphi 0, %s92
      %s94 = sphi 0, %s92
      %s95 = sphi 0, %s94
      %s109 = sphi 0, %s95
      %s113 = sphi 0, %s113
      %s115 = sphi 0, %s113
      %s116 = sphi 0, %s115
      %s130 = sphi 0, %s116
      %s134 = sphi 0, %s134
      %s136 = sphi 0, %s134
      %s137 = sphi 0, %s136
      %s151 = sphi 0, %s137
      %s155 = sphi 0, %s155
      %s157 = sphi 0, %s155
      %s158 = sphi 0, %s157
      %s172 = sphi 0, %s158
      %s178 = sphi 0, %s180
      %s181 = sphi 0, %s178
      %s182 = sphi 0, %s181
      %s198 = sphi 0, %s182
      %s204 = sphi 0, %s206
      %s207 = sphi 0, %s204
      %s208 = sphi 0, %s207
      %s224 = sphi 0, %s208
      %s232 = sphi 0, %s234
      %s235 = sphi 0, %s232
      %s236 = sphi 0, %s235
      %s252 = sphi 0, %s236
    $region4: #{tpu_custom_call.1} parent=1 // loop_header_branch
      %23 = sbr.rel (%p21) target = $region8
    $region5: #{tpu_custom_call.1} parent=1 // loop_body
      %s25 = ssub.s32 %s20, 1
      %s26 = ssub.s32 %s20, 2
      %s33 = sadd.s32 1, %s28
      %p34 = scmp.ge.s32.totalorder %s33, 2
      %s35 = scalar_select %p34, 0, %s33
      %s36 = sadd.s32 1, %s27
      %s37 = scalar_select %p34, %s36, %s27
      %p38 = scmp.ge.s32.totalorder %s37, 1
      %s39 = scalar_select %p38, 0, %s37
      %s40 = ssub.s32 %s27, %s39
      %p41 = scmp.eq.s32.totalorder %s40, 0
      %s43 = sadd.s32 %s42, 1
      %s44 = scalar_select %p41, %s42, %s43
      %p47 = pneg %p41
      %p48 = scmp.eq.s32.totalorder %s20, 1
      %p49 = por %p47, %p48
      %p50 = scmp.ne.s32.totalorder %s42, %s45
      %p51 = scmp.eq.s32.totalorder %s20, 0
      %p52 = por %p50, %p51
      %p53 = scmp.ne.s32.totalorder %s42, %s45
      %p54 = scmp.eq.s32.totalorder %s25, 1
      %p55 = por %p53, %p54
      %p56 = scmp.ne.s32.totalorder %s45, %s46
      %p57 = scmp.eq.s32.totalorder %s25, 0
      %p58 = por %p56, %p57
      %p59 = scmp.ne.s32.totalorder %s45, %s46
      %p60 = scmp.eq.s32.totalorder %s26, 1
      %p61 = por %p59, %p60
      %p63 = scmp.ne.s32.totalorder %s46, %s62
      %p64 = scmp.eq.s32.totalorder %s26, 0
      %p65 = por %p63, %p64
      %s66 = ssub.s32 %s27, %s39
      %p67 = scmp.eq.s32.totalorder %s66, 0
      %s69 = sadd.s32 %s68, 1
      %s70 = scalar_select %p67, %s68, %s69
      %p73 = pneg %p67
      %p74 = scmp.eq.s32.totalorder %s20, 1
      %p75 = por %p73, %p74
      %p76 = scmp.ne.s32.totalorder %s68, %s71
      %p77 = scmp.eq.s32.totalorder %s20, 0
      %p78 = por %p76, %p77
      %p79 = scmp.ne.s32.totalorder %s68, %s71
      %p80 = scmp.eq.s32.totalorder %s25, 1
      %p81 = por %p79, %p80
      %p82 = scmp.ne.s32.totalorder %s71, %s72
      %p83 = scmp.eq.s32.totalorder %s25, 0
      %p84 = por %p82, %p83
      %p85 = scmp.ne.s32.totalorder %s71, %s72
      %p86 = scmp.eq.s32.totalorder %s26, 1
      %p87 = por %p85, %p86
      %p89 = scmp.ne.s32.totalorder %s72, %s88
      %p90 = scmp.eq.s32.totalorder %s26, 0
      %p91 = por %p89, %p90
      %s93 = sadd.s32 %s92, 1
      %p96 = scmp.eq.s32.totalorder %s20, 1
      %p97 = scmp.ne.s32.totalorder %s92, %s94
      %p98 = scmp.eq.s32.totalorder %s20, 0
      %p99 = por %p97, %p98
      %p100 = scmp.ne.s32.totalorder %s92, %s94
      %p101 = scmp.eq.s32.totalorder %s25, 1
      %p102 = por %p100, %p101
      %p103 = scmp.ne.s32.totalorder %s94, %s95
      %p104 = scmp.eq.s32.totalorder %s25, 0
      %p105 = por %p103, %p104
      %p106 = scmp.ne.s32.totalorder %s94, %s95
      %p107 = scmp.eq.s32.totalorder %s26, 1
      %p108 = por %p106, %p107
      %p110 = scmp.ne.s32.totalorder %s95, %s109
      %p111 = scmp.eq.s32.totalorder %s26, 0
      %p112 = por %p110, %p111
      %s114 = sadd.s32 %s113, 1
      %p117 = scmp.eq.s32.totalorder %s20, 1
      %p118 = scmp.ne.s32.totalorder %s113, %s115
      %p119 = scmp.eq.s32.totalorder %s20, 0
      %p120 = por %p118, %p119
      %p121 = scmp.ne.s32.totalorder %s113, %s115
      %p122 = scmp.eq.s32.totalorder %s25, 1
      %p123 = por %p121, %p122
      %p124 = scmp.ne.s32.totalorder %s115, %s116
      %p125 = scmp.eq.s32.totalorder %s25, 0
      %p126 = por %p124, %p125
      %p127 = scmp.ne.s32.totalorder %s115, %s116
      %p128 = scmp.eq.s32.totalorder %s26, 1
      %p129 = por %p127, %p128
      %p131 = scmp.ne.s32.totalorder %s116, %s130
      %p132 = scmp.eq.s32.totalorder %s26, 0
      %p133 = por %p131, %p132
      %s135 = sadd.s32 %s134, 1
      %p138 = scmp.eq.s32.totalorder %s20, 1
      %p139 = scmp.ne.s32.totalorder %s134, %s136
      %p140 = scmp.eq.s32.totalorder %s20, 0
      %p141 = por %p139, %p140
      %p142 = scmp.ne.s32.totalorder %s134, %s136
      %p143 = scmp.eq.s32.totalorder %s25, 1
      %p144 = por %p142, %p143
      %p145 = scmp.ne.s32.totalorder %s136, %s137
      %p146 = scmp.eq.s32.totalorder %s25, 0
      %p147 = por %p145, %p146
      %p148 = scmp.ne.s32.totalorder %s136, %s137
      %p149 = scmp.eq.s32.totalorder %s26, 1
      %p150 = por %p148, %p149
      %p152 = scmp.ne.s32.totalorder %s137, %s151
      %p153 = scmp.eq.s32.totalorder %s26, 0
      %p154 = por %p152, %p153
      %s156 = sadd.s32 %s155, 1
      %p159 = scmp.eq.s32.totalorder %s20, 1
      %p160 = scmp.ne.s32.totalorder %s155, %s157
      %p161 = scmp.eq.s32.totalorder %s20, 0
      %p162 = por %p160, %p161
      %p163 = scmp.ne.s32.totalorder %s155, %s157
      %p164 = scmp.eq.s32.totalorder %s25, 1
      %p165 = por %p163, %p164
      %p166 = scmp.ne.s32.totalorder %s157, %s158
      %p167 = scmp.eq.s32.totalorder %s25, 0
      %p168 = por %p166, %p167
      %p169 = scmp.ne.s32.totalorder %s157, %s158
      %p170 = scmp.eq.s32.totalorder %s26, 1
      %p171 = por %p169, %p170
      %p173 = scmp.ne.s32.totalorder %s158, %s172
      %p174 = scmp.eq.s32.totalorder %s26, 0
      %p175 = por %p173, %p174
      %s176 = ssub.s32 %s28, %s35
      %p177 = scmp.eq.s32.totalorder %s176, 0
      %s179 = sadd.s32 %s178, 1
      %s180 = scalar_select %p177, %s178, %s179
      %p183 = pneg %p177
      %p184 = scmp.eq.s32.totalorder %s20, 1
      %p185 = por %p183, %p184
      %p186 = scmp.ne.s32.totalorder %s178, %s181
      %p187 = scmp.eq.s32.totalorder %s20, 0
      %p188 = por %p186, %p187
      %p189 = scmp.ne.s32.totalorder %s178, %s181
      %p190 = scmp.eq.s32.totalorder %s25, 1
      %p191 = por %p189, %p190
      %p192 = scmp.ne.s32.totalorder %s181, %s182
      %p193 = scmp.eq.s32.totalorder %s25, 0
      %p194 = por %p192, %p193
      %p195 = scmp.ne.s32.totalorder %s181, %s182
      %p196 = scmp.eq.s32.totalorder %s26, 1
      %p197 = por %p195, %p196
      %p199 = scmp.ne.s32.totalorder %s182, %s198
      %p200 = scmp.eq.s32.totalorder %s26, 0
      %p201 = por %p199, %p200
      %s202 = ssub.s32 %s28, %s35
      %p203 = scmp.eq.s32.totalorder %s202, 0
      %s205 = sadd.s32 %s204, 1
      %s206 = scalar_select %p203, %s204, %s205
      %p209 = pneg %p203
      %p210 = scmp.eq.s32.totalorder %s20, 1
      %p211 = por %p209, %p210
      %p212 = scmp.ne.s32.totalorder %s204, %s207
      %p213 = scmp.eq.s32.totalorder %s20, 0
      %p214 = por %p212, %p213
      %p215 = scmp.ne.s32.totalorder %s204, %s207
      %p216 = scmp.eq.s32.totalorder %s25, 1
      %p217 = por %p215, %p216
      %p218 = scmp.ne.s32.totalorder %s207, %s208
      %p219 = scmp.eq.s32.totalorder %s25, 0
      %p220 = por %p218, %p219
      %p221 = scmp.ne.s32.totalorder %s207, %s208
      %p222 = scmp.eq.s32.totalorder %s26, 1
      %p223 = por %p221, %p222
      %p225 = scmp.ne.s32.totalorder %s208, %s224
      %p226 = scmp.eq.s32.totalorder %s26, 0
      %p227 = por %p225, %p226
      %s228 = ssub.s32 %s27, %s39
      %s229 = ssub.s32 %s28, %s35
      %s230 = sor.u32 %s228, %s229
      %p231 = scmp.eq.s32.totalorder %s230, 0
      %s233 = sadd.s32 %s232, 1
      %s234 = scalar_select %p231, %s232, %s233
      %p237 = pneg %p231
      %p238 = scmp.eq.s32.totalorder %s20, 1
      %p239 = por %p237, %p238
      %p240 = scmp.ne.s32.totalorder %s232, %s235
      %p241 = scmp.eq.s32.totalorder %s20, 0
      %p242 = por %p240, %p241
      %p243 = scmp.ne.s32.totalorder %s232, %s235
      %p244 = scmp.eq.s32.totalorder %s25, 1
      %p245 = por %p243, %p244
      %p246 = scmp.ne.s32.totalorder %s235, %s236
      %p247 = scmp.eq.s32.totalorder %s25, 0
      %p248 = por %p246, %p247
      %p249 = scmp.ne.s32.totalorder %s235, %s236
      %p250 = scmp.eq.s32.totalorder %s26, 1
      %p251 = por %p249, %p250
      %p253 = scmp.ne.s32.totalorder %s236, %s252
      %p254 = scmp.eq.s32.totalorder %s26, 0
      %p255 = por %p253, %p254
      %p256 = scmp.le.s32.totalorder 1, %s20
      %p257 = scmp.lt.s32.totalorder %s20, 3
      %p258 = pnand %p256, %p257
      %p259 = pneg %p258
      // Predicated region
      $region9: #{tpu_custom_call.1} parent=5 // pred_check
        _
      $region10: #{tpu_custom_call.1} parent=5 // pred_check_branch
        %261 = sbr.rel (%p258) target = $region12
      $region11: #{tpu_custom_call.1} parent=5 // pred_region
        %s262 = ssub.s32 %s20, 1
        // Predicated region
        $region13: #{tpu_custom_call.1} parent=11 // pred_check
          %p263 = pneg %p58
        $region14: #{tpu_custom_call.1} parent=11 // pred_check_branch
          %265 = sbr.rel (%p263) target = $region16
        $region15: #{tpu_custom_call.1} parent=11 // pred_region
          %s267 = ssub.s32 64, 64
          %268 = vsyncadd [#allocation3], %s267
          %s269 = smul.addr %s29, 64
          %s270 = scalar_lea.hbm %s0, %s269
          %s272 = sshll.u32 [#allocation2], 4
          %s273 = int_to_ptr.vmem [resolvable:$true] %s272
          %275 = dma.hbm_to_vmem [thread:$0]  %s270, 64, %s273, [#allocation3]
        $region16: #{tpu_custom_call.1} parent=11 // pred_fallthru
          _
        // Predicated region
        $region17: #{tpu_custom_call.1} parent=11 // pred_check
          %p276 = pneg %p84
        $region18: #{tpu_custom_call.1} parent=11 // pred_check_branch
          %278 = sbr.rel (%p276) target = $region20
        $region19: #{tpu_custom_call.1} parent=11 // pred_region
          %s280 = ssub.s32 64, 64
          %281 = vsyncadd [#allocation6], %s280
          %s282 = smul.addr %s29, 64
          %s283 = scalar_lea.hbm %s1, %s282
          %s285 = sshll.u32 [#allocation5], 4
          %s286 = int_to_ptr.vmem [resolvable:$true] %s285
          %288 = dma.hbm_to_vmem [thread:$0]  %s283, 64, %s286, [#allocation6]
        $region20: #{tpu_custom_call.1} parent=11 // pred_fallthru
          _
        // Predicated region
        $region21: #{tpu_custom_call.1} parent=11 // pred_check
          %p289 = pneg %p105
        $region22: #{tpu_custom_call.1} parent=11 // pred_check_branch
          %291 = sbr.rel (%p289) target = $region24
        $region23: #{tpu_custom_call.1} parent=11 // pred_region
          %s293 = ssub.s32 1024, 1024
          %294 = vsyncadd [#allocation6], %s293
          %s295 = sshll.u32 [#allocation7], 4
          %s296 = int_to_ptr.vmem [resolvable:$true] %s295
          %301 = dma.hbm_to_vmem [thread:$0]  %s2, 1024, %s296, [#allocation6], 64, 64, 4
        $region24: #{tpu_custom_call.1} parent=11 // pred_fallthru
          _
        // Predicated region
        $region25: #{tpu_custom_call.1} parent=11 // pred_check
          %p302 = pneg %p126
        $region26: #{tpu_custom_call.1} parent=11 // pred_check_branch
          %304 = sbr.rel (%p302) target = $region28
        $region27: #{tpu_custom_call.1} parent=11 // pred_region
          _
        $region28: #{tpu_custom_call.1} parent=11 // pred_fallthru
          _
        // Predicated region
        $region29: #{tpu_custom_call.1} parent=11 // pred_check
          %p305 = pneg %p147
        $region30: #{tpu_custom_call.1} parent=11 // pred_check_branch
          %307 = sbr.rel (%p305) target = $region32
        $region31: #{tpu_custom_call.1} parent=11 // pred_region
          %s309 = ssub.s32 1024, 1024
          %310 = vsyncadd [#allocation9], %s309
          %s311 = sshll.u32 [#allocation8], 4
          %s312 = int_to_ptr.vmem [resolvable:$true] %s311
          %317 = dma.hbm_to_vmem [thread:$0]  %s4, 1024, %s312, [#allocation9], 64, 64, 4
        $region32: #{tpu_custom_call.1} parent=11 // pred_fallthru
          _
        // Predicated region
        $region33: #{tpu_custom_call.1} parent=11 // pred_check
          %p318 = pneg %p168
        $region34: #{tpu_custom_call.1} parent=11 // pred_check_branch
          %320 = sbr.rel (%p318) target = $region36
        $region35: #{tpu_custom_call.1} parent=11 // pred_region
          _
        $region36: #{tpu_custom_call.1} parent=11 // pred_fallthru
          _
      $region12: #{tpu_custom_call.1} parent=5 // pred_fallthru
        _
      %p321 = scmp.lt.s32.totalorder %s20, 2
      // Predicated region
      $region37: #{tpu_custom_call.1} parent=5 // pred_check
        %p322 = pneg %p321
      $region38: #{tpu_custom_call.1} parent=5 // pred_check_branch
        %324 = sbr.rel (%p322) target = $region40
      $region39: #{tpu_custom_call.1} parent=5 // pred_region
        // Predicated region
        $region41: #{tpu_custom_call.1} parent=39 // pred_check
          %p325 = pneg %p188
        $region42: #{tpu_custom_call.1} parent=39 // pred_check_branch
          %327 = sbr.rel (%p325) target = $region44
        $region43: #{tpu_custom_call.1} parent=39 // pred_region
          %s328 = sand.u32 %s20, 1
          %s329 = scalar_lea.sflag [#allocation3], %s328
          %s330 = sand.u32 %s178, 1
          %s331 = smul.addr %s330, 64
          %s332 = scalar_lea.vmem [#allocation10], %s331
          %s334 = ssub.s32 1024, 1024
          %335 = vsyncadd %s329, %s334
          %s336 = smul.addr %s28, 64
          %s337 = scalar_lea.hbm %s6, %s336
          %s338 = sshll.u32 %s332, 4
          %s339 = int_to_ptr.vmem [resolvable:$true] %s338
          %344 = dma.hbm_to_vmem [thread:$0]  %s337, 1024, %s339, %s329, 128, 64, 4
        $region44: #{tpu_custom_call.1} parent=39 // pred_fallthru
          _
        // Predicated region
        $region45: #{tpu_custom_call.1} parent=39 // pred_check
          %p345 = pneg %p214
        $region46: #{tpu_custom_call.1} parent=39 // pred_check_branch
          %347 = sbr.rel (%p345) target = $region48
        $region47: #{tpu_custom_call.1} parent=39 // pred_region
          %p348 = scmp.lt.s32.totalorder %s28, 1
          %s349 = scalar_select %p348, %s28, 1
          %s350 = scalar_lea.vmem %s7, %s349
        $region48: #{tpu_custom_call.1} parent=39 // pred_fallthru
          _
      $region40: #{tpu_custom_call.1} parent=5 // pred_fallthru
        _
      %p351 = scmp.le.s32.totalorder 1, %s20
      %p352 = scmp.lt.s32.totalorder %s20, 3
      %p353 = pnand %p351, %p352
      %p354 = pneg %p353
      // Predicated region
      $region49: #{tpu_custom_call.1} parent=5 // pred_check
        _
      $region50: #{tpu_custom_call.1} parent=5 // pred_check_branch
        %356 = sbr.rel (%p353) target = $region52
      $region51: #{tpu_custom_call.1} parent=5 // pred_region
        %s357 = ssub.s32 %s20, 1
        // Predicated region
        $region53: #{tpu_custom_call.1} parent=51 // pred_check
          %p358 = pneg %p58
        $region54: #{tpu_custom_call.1} parent=51 // pred_check_branch
          %360 = sbr.rel (%p358) target = $region56
        $region55: #{tpu_custom_call.1} parent=51 // pred_region
          %361 = dma.done [#allocation3], 64
        $region56: #{tpu_custom_call.1} parent=51 // pred_fallthru
          _
        // Predicated region
        $region57: #{tpu_custom_call.1} parent=51 // pred_check
          %p362 = pneg %p84
        $region58: #{tpu_custom_call.1} parent=51 // pred_check_branch
          %364 = sbr.rel (%p362) target = $region60
        $region59: #{tpu_custom_call.1} parent=51 // pred_region
          %365 = dma.done [#allocation6], 64
        $region60: #{tpu_custom_call.1} parent=51 // pred_fallthru
          _
        // Predicated region
        $region61: #{tpu_custom_call.1} parent=51 // pred_check
          %p366 = pneg %p105
        $region62: #{tpu_custom_call.1} parent=51 // pred_check_branch
          %368 = sbr.rel (%p366) target = $region64
        $region63: #{tpu_custom_call.1} parent=51 // pred_region
          %369 = dma.done [#allocation6], 1024
        $region64: #{tpu_custom_call.1} parent=51 // pred_fallthru
          _
        // Predicated region
        $region65: #{tpu_custom_call.1} parent=51 // pred_check
          %p370 = pneg %p147
        $region66: #{tpu_custom_call.1} parent=51 // pred_check_branch
          %372 = sbr.rel (%p370) target = $region68
        $region67: #{tpu_custom_call.1} parent=51 // pred_region
          %373 = dma.done [#allocation9], 1024
        $region68: #{tpu_custom_call.1} parent=51 // pred_fallthru
          _
        %s374 = sand.u32 %s25, 1
        %s375 = scalar_lea.sflag [#allocation3], %s374
        %s376 = sand.u32 %s181, 1
        %s377 = smul.addr %s376, 64
        %s378 = scalar_lea.vmem [#allocation10], %s377
        // Predicated region
        $region69: #{tpu_custom_call.1} parent=51 // pred_check
          %p379 = pneg %p194
        $region70: #{tpu_custom_call.1} parent=51 // pred_check_branch
          %381 = sbr.rel (%p379) target = $region72
        $region71: #{tpu_custom_call.1} parent=51 // pred_region
          %382 = dma.done %s375, 1024
        $region72: #{tpu_custom_call.1} parent=51 // pred_fallthru
          _
        %p383 = pneg %p58
        %p384 = pneg %p55
        %p385 = pneg %p84
        %p386 = pneg %p81
        %p387 = pneg %p105
        %p388 = pneg %p102
        %p389 = pneg %p126
        %p390 = pneg %p123
        %p391 = pneg %p147
        %p392 = pneg %p144
        %p393 = pneg %p168
        %p394 = pneg %p165
        %s395 = sand.u32 %s25, 1
        %s396 = scalar_lea.sflag [#allocation3], %s395
        %s397 = sand.u32 %s181, 1
        %s398 = smul.addr %s397, 64
        %s399 = scalar_lea.vmem [#allocation10], %s398
        %p400 = pneg %p194
        %p401 = pneg %p191
        %p402 = scmp.lt.s32.totalorder %s30, 1
        %s403 = scalar_select %p402, %s30, 1
        %s404 = scalar_lea.vmem %s7, %s403
        %p405 = pneg %p220
        %p406 = pneg %p217
        %p407 = pneg %p248
        %p408 = pneg %p245
        %s409 = sand.u32 %s235, 1
        %s410 = scalar_lea.sflag [#allocation4], %s409
        %s411 = sand.u32 %s235, 1
        %s412 = smul.addr %s411, 8
        %s413 = scalar_lea.vmem [#allocation11], %s412
        %p414 = scmp.lt.s32.totalorder %s30, 1
        %s415 = scalar_select %p414, %s30, 1
        %s416 = scalar_lea.vmem %s7, %s415
        %v418 = vld [vmem:[#allocation2] sm:$0xf]
        %v419 = vld [vmem:[#allocation7] sm:$0xf]
        %v420 = vld [vmem:[#allocation7 + $0x4] sm:$0xf]
        %v421 = vld [vmem:[#allocation7 + $0x8] sm:$0xf]
        %v422 = vld [vmem:[#allocation7 + $0xc] sm:$0xf]
        %v423 = vld [vmem:[#allocation7 + $0x10] sm:$0xf]
        %v424 = vld [vmem:[#allocation7 + $0x14] sm:$0xf]
        %v425 = vld [vmem:[#allocation7 + $0x18] sm:$0xf]
        %v426 = vld [vmem:[#allocation7 + $0x1c] sm:$0xf]
        %v427 = vld [vmem:[#allocation7 + $0x20] sm:$0xf]
        %v428 = vld [vmem:[#allocation7 + $0x24] sm:$0xf]
        %v429 = vld [vmem:[#allocation7 + $0x28] sm:$0xf]
        %v430 = vld [vmem:[#allocation7 + $0x2c] sm:$0xf]
        %v431 = vld [vmem:[#allocation7 + $0x30] sm:$0xf]
        %v432 = vld [vmem:[#allocation7 + $0x34] sm:$0xf]
        %v433 = vld [vmem:[#allocation7 + $0x38] sm:$0xf]
        %v434 = vld [vmem:[#allocation7 + $0x3c] sm:$0xf]
        %v435 = vld [vmem:[%s3] sm:$0x1]
        %v437 = vlaneseq
        %v438 = vshrl.u32 %v437, 7
        %v439 = vsub.s32 0, %v438
        %v440 = vrot.slane %v435, %v439
        %v458 = vunpack.c.l.b16 %v419
        %v459 = vunpack.c.l.b16 %v420
        %v460 = vunpack.c.l.b16 %v421
        %v461 = vunpack.c.l.b16 %v422
        %v462 = vunpack.c.l.b16 %v423
        %v463 = vunpack.c.l.b16 %v424
        %v464 = vunpack.c.l.b16 %v425
        %v465 = vunpack.c.l.b16 %v426
        %v466 = vunpack.c.l.b16 %v427
        %v467 = vunpack.c.l.b16 %v428
        %v468 = vunpack.c.l.b16 %v429
        %v469 = vunpack.c.l.b16 %v430
        %v470 = vunpack.c.l.b16 %v431
        %v471 = vunpack.c.l.b16 %v432
        %v472 = vunpack.c.l.b16 %v433
        %v473 = vunpack.c.l.b16 %v434
        %v474 = vpack.c.b16 %v459, %v458
        %v475 = vpack.c.b16 %v461, %v460
        %v476 = vpack.c.b16 %v463, %v462
        %v477 = vpack.c.b16 %v465, %v464
        %v478 = vpack.c.b16 %v467, %v466
        %v479 = vpack.c.b16 %v469, %v468
        %v480 = vpack.c.b16 %v471, %v470
        %v481 = vpack.c.b16 %v473, %v472
        %490 = vmatprep.subr.bf16.mxu0 0
        %491 = vmatpush1.bf16.msra.mxu0 %v474
        %492 = vmatprep.subr.bf16.mxu0 0
        %493 = vmatpush1.bf16.msra.mxu0 %v475
        %494 = vmatprep.subr.bf16.mxu0 0
        %495 = vmatpush1.bf16.msra.mxu0 %v476
        %496 = vmatprep.subr.bf16.mxu0 0
        %497 = vmatpush1.bf16.msra.mxu0 %v477
        %498 = vmatprep.subr.bf16.mxu0 0
        %499 = vmatpush1.bf16.msra.mxu0 %v478
        %500 = vmatprep.subr.bf16.mxu0 0
        %501 = vmatpush1.bf16.msra.mxu0 %v479
        %502 = vmatprep.subr.bf16.mxu0 0
        %503 = vmatpush1.bf16.msra.mxu0 %v480
        %504 = vmatprep.subr.bf16.mxu0 0
        %505 = vmatpush1.bf16.msra.mxu0 %v481
        %506 = vmatprep.subr.bf16.mxu0 0
        %507 = vmatpush1.bf16.msra.mxu0 0
        %508 = vmatprep.subr.bf16.mxu0 0
        %509 = vmatpush1.bf16.msra.mxu0 0
        %510 = vmatprep.subr.bf16.mxu0 0
        %511 = vmatpush1.bf16.msra.mxu0 0
        %512 = vmatprep.subr.bf16.mxu0 0
        %513 = vmatpush1.bf16.msra.mxu0 0
        %514 = vmatprep.subr.bf16.mxu0 0
        %515 = vmatpush1.bf16.msra.mxu0 0
        %516 = vmatprep.subr.bf16.mxu0 0
        %517 = vmatpush1.bf16.msra.mxu0 0
        %518 = vmatprep.subr.bf16.mxu0 0
        %519 = vmatpush1.bf16.msra.mxu0 0
        %520 = vmatprep.subr.bf16.mxu0 0
        %521 = vmatpush1.bf16.msra.mxu0 0
        %522 = vmatprep.mubr.bf16.mxu0 0
        %523 = vmatmul.mubr.bf16.gmra.mrb[0].mxu0 %v418
        %v524 = vpop.f32.mrb[0].mxu0
        %v525 = vadd.f32 %v440, %v524
        %v526 = vpop.f32.mrb[0].mxu0
        %v527 = vpop.f32.mrb[0].mxu0
        %v528 = vpop.f32.mrb[0].mxu0
        %529 = vdwg.mxu0
        %v530 = vld [vmem:[#allocation5] sm:$0xf]
        %v531 = vld [vmem:[#allocation8] sm:$0xf]
        %v532 = vld [vmem:[#allocation8 + $0x4] sm:$0xf]
        %v533 = vld [vmem:[#allocation8 + $0x8] sm:$0xf]
        %v534 = vld [vmem:[#allocation8 + $0xc] sm:$0xf]
        %v535 = vld [vmem:[#allocation8 + $0x10] sm:$0xf]
        %v536 = vld [vmem:[#allocation8 + $0x14] sm:$0xf]
        %v537 = vld [vmem:[#allocation8 + $0x18] sm:$0xf]
        %v538 = vld [vmem:[#allocation8 + $0x1c] sm:$0xf]
        %v539 = vld [vmem:[#allocation8 + $0x20] sm:$0xf]
        %v540 = vld [vmem:[#allocation8 + $0x24] sm:$0xf]
        %v541 = vld [vmem:[#allocation8 + $0x28] sm:$0xf]
        %v542 = vld [vmem:[#allocation8 + $0x2c] sm:$0xf]
        %v543 = vld [vmem:[#allocation8 + $0x30] sm:$0xf]
        %v544 = vld [vmem:[#allocation8 + $0x34] sm:$0xf]
        %v545 = vld [vmem:[#allocation8 + $0x38] sm:$0xf]
        %v546 = vld [vmem:[#allocation8 + $0x3c] sm:$0xf]
        %v547 = vld [vmem:[%s5] sm:$0x1]
        %v549 = vlaneseq
        %v550 = vshrl.u32 %v549, 7
        %v551 = vsub.s32 0, %v550
        %v552 = vrot.slane %v547, %v551
        %v570 = vunpack.c.l.b16 %v531
        %v571 = vunpack.c.l.b16 %v532
        %v572 = vunpack.c.l.b16 %v533
        %v573 = vunpack.c.l.b16 %v534
        %v574 = vunpack.c.l.b16 %v535
        %v575 = vunpack.c.l.b16 %v536
        %v576 = vunpack.c.l.b16 %v537
        %v577 = vunpack.c.l.b16 %v538
        %v578 = vunpack.c.l.b16 %v539
        %v579 = vunpack.c.l.b16 %v540
        %v580 = vunpack.c.l.b16 %v541
        %v581 = vunpack.c.l.b16 %v542
        %v582 = vunpack.c.l.b16 %v543
        %v583 = vunpack.c.l.b16 %v544
        %v584 = vunpack.c.l.b16 %v545
        %v585 = vunpack.c.l.b16 %v546
        %v586 = vpack.c.b16 %v571, %v570
        %v587 = vpack.c.b16 %v573, %v572
        %v588 = vpack.c.b16 %v575, %v574
        %v589 = vpack.c.b16 %v577, %v576
        %v590 = vpack.c.b16 %v579, %v578
        %v591 = vpack.c.b16 %v581, %v580
        %v592 = vpack.c.b16 %v583, %v582
        %v593 = vpack.c.b16 %v585, %v584
        %602 = vmatprep.subr.bf16.mxu0 0
        %603 = vmatpush1.bf16.msra.mxu0 %v586
        %604 = vmatprep.subr.bf16.mxu0 0
        %605 = vmatpush1.bf16.msra.mxu0 %v587
        %606 = vmatprep.subr.bf16.mxu0 0
        %607 = vmatpush1.bf16.msra.mxu0 %v588
        %608 = vmatprep.subr.bf16.mxu0 0
        %609 = vmatpush1.bf16.msra.mxu0 %v589
        %610 = vmatprep.subr.bf16.mxu0 0
        %611 = vmatpush1.bf16.msra.mxu0 %v590
        %612 = vmatprep.subr.bf16.mxu0 0
        %613 = vmatpush1.bf16.msra.mxu0 %v591
        %614 = vmatprep.subr.bf16.mxu0 0
        %615 = vmatpush1.bf16.msra.mxu0 %v592
        %616 = vmatprep.subr.bf16.mxu0 0
        %617 = vmatpush1.bf16.msra.mxu0 %v593
        %618 = vmatprep.subr.bf16.mxu0 0
        %619 = vmatpush1.bf16.msra.mxu0 0
        %620 = vmatprep.subr.bf16.mxu0 0
        %621 = vmatpush1.bf16.msra.mxu0 0
        %622 = vmatprep.subr.bf16.mxu0 0
        %623 = vmatpush1.bf16.msra.mxu0 0
        %624 = vmatprep.subr.bf16.mxu0 0
        %625 = vmatpush1.bf16.msra.mxu0 0
        %626 = vmatprep.subr.bf16.mxu0 0
        %627 = vmatpush1.bf16.msra.mxu0 0
        %628 = vmatprep.subr.bf16.mxu0 0
        %629 = vmatpush1.bf16.msra.mxu0 0
        %630 = vmatprep.subr.bf16.mxu0 0
        %631 = vmatpush1.bf16.msra.mxu0 0
        %632 = vmatprep.subr.bf16.mxu0 0
        %633 = vmatpush1.bf16.msra.mxu0 0
        %634 = vmatprep.mubr.bf16.mxu0 0
        %635 = vmatmul.mubr.bf16.gmra.mrb[0].mxu0 %v530
        %v636 = vpop.f32.mrb[0].mxu0
        %v637 = vadd.f32 %v552, %v636
        %v638 = vpop.f32.mrb[0].mxu0
        %v639 = vpop.f32.mrb[0].mxu0
        %v640 = vpop.f32.mrb[0].mxu0
        %641 = vdwg.mxu0
        %v642 = vmul.f32 %v525, %v637
        %v643 = vpack.c.bf16 %v642, %v642
        %v644 = vld [vmem:[%s378] sm:$0xf]
        %v645 = vld [vmem:[%s378 + $0x4] sm:$0xf]
        %v646 = vld [vmem:[%s378 + $0x8] sm:$0xf]
        %v647 = vld [vmem:[%s378 + $0xc] sm:$0xf]
        %v648 = vld [vmem:[%s378 + $0x10] sm:$0xf]
        %v649 = vld [vmem:[%s378 + $0x14] sm:$0xf]
        %v650 = vld [vmem:[%s378 + $0x18] sm:$0xf]
        %v651 = vld [vmem:[%s378 + $0x1c] sm:$0xf]
        %v652 = vld [vmem:[%s378 + $0x20] sm:$0xf]
        %v653 = vld [vmem:[%s378 + $0x24] sm:$0xf]
        %v654 = vld [vmem:[%s378 + $0x28] sm:$0xf]
        %v655 = vld [vmem:[%s378 + $0x2c] sm:$0xf]
        %v656 = vld [vmem:[%s378 + $0x30] sm:$0xf]
        %v657 = vld [vmem:[%s378 + $0x34] sm:$0xf]
        %v658 = vld [vmem:[%s378 + $0x38] sm:$0xf]
        %v659 = vld [vmem:[%s378 + $0x3c] sm:$0xf]
        %v660 = vld [vmem:[%s416] sm:$0x1]
        %v662 = vlaneseq
        %v663 = vshrl.u32 %v662, 7
        %v664 = vsub.s32 0, %v663
        %v665 = vrot.slane %v660, %v664
        %v683 = vunpack.c.l.b16 %v644
        %v684 = vunpack.c.l.b16 %v645
        %v685 = vunpack.c.l.b16 %v646
        %v686 = vunpack.c.l.b16 %v647
        %v687 = vunpack.c.l.b16 %v648
        %v688 = vunpack.c.l.b16 %v649
        %v689 = vunpack.c.l.b16 %v650
        %v690 = vunpack.c.l.b16 %v651
        %v691 = vunpack.c.l.b16 %v652
        %v692 = vunpack.c.l.b16 %v653
        %v693 = vunpack.c.l.b16 %v654
        %v694 = vunpack.c.l.b16 %v655
        %v695 = vunpack.c.l.b16 %v656
        %v696 = vunpack.c.l.b16 %v657
        %v697 = vunpack.c.l.b16 %v658
        %v698 = vunpack.c.l.b16 %v659
        %v699 = vpack.c.b16 %v684, %v683
        %v700 = vpack.c.b16 %v686, %v685
        %v701 = vpack.c.b16 %v688, %v687
        %v702 = vpack.c.b16 %v690, %v689
        %v703 = vpack.c.b16 %v692, %v691
        %v704 = vpack.c.b16 %v694, %v693
        %v705 = vpack.c.b16 %v696, %v695
        %v706 = vpack.c.b16 %v698, %v697
        %715 = vmatprep.subr.bf16.mxu0 0
        %716 = vmatpush1.bf16.msra.mxu0 %v699
        %717 = vmatprep.subr.bf16.mxu0 0
        %718 = vmatpush1.bf16.msra.mxu0 %v700
        %719 = vmatprep.subr.bf16.mxu0 0
        %720 = vmatpush1.bf16.msra.mxu0 %v701
        %721 = vmatprep.subr.bf16.mxu0 0
        %722 = vmatpush1.bf16.msra.mxu0 %v702
        %723 = vmatprep.subr.bf16.mxu0 0
        %724 = vmatpush1.bf16.msra.mxu0 %v703
        %725 = vmatprep.subr.bf16.mxu0 0
        %726 = vmatpush1.bf16.msra.mxu0 %v704
        %727 = vmatprep.subr.bf16.mxu0 0
        %728 = vmatpush1.bf16.msra.mxu0 %v705
        %729 = vmatprep.subr.bf16.mxu0 0
        %730 = vmatpush1.bf16.msra.mxu0 %v706
        %731 = vmatprep.subr.bf16.mxu0 0
        %732 = vmatpush1.bf16.msra.mxu0 0
        %733 = vmatprep.subr.bf16.mxu0 0
        %734 = vmatpush1.bf16.msra.mxu0 0
        %735 = vmatprep.subr.bf16.mxu0 0
        %736 = vmatpush1.bf16.msra.mxu0 0
        %737 = vmatprep.subr.bf16.mxu0 0
        %738 = vmatpush1.bf16.msra.mxu0 0
        %739 = vmatprep.subr.bf16.mxu0 0
        %740 = vmatpush1.bf16.msra.mxu0 0
        %741 = vmatprep.subr.bf16.mxu0 0
        %742 = vmatpush1.bf16.msra.mxu0 0
        %743 = vmatprep.subr.bf16.mxu0 0
        %744 = vmatpush1.bf16.msra.mxu0 0
        %745 = vmatprep.subr.bf16.mxu0 0
        %746 = vmatpush1.bf16.msra.mxu0 0
        %747 = vmatprep.mubr.bf16.mxu0 0
        %748 = vmatmul.mubr.bf16.gmra.mrb[0].mxu0 %v643
        %v749 = vpop.f32.mrb[0].mxu0
        %v750 = vadd.f32 %v665, %v749
        %v751 = vpop.f32.mrb[0].mxu0
        %v752 = vpop.f32.mrb[0].mxu0
        %v753 = vpop.f32.mrb[0].mxu0
        %754 = vdwg.mxu0
        %755 = vst [vmem:[%s413] sm:$0xff] %v750
        %s756 = sand.u32 %s235, 1
        %s757 = scalar_lea.sflag [#allocation4], %s756
        %s758 = sand.u32 %s235, 1
        %s759 = smul.addr %s758, 8
        %s760 = scalar_lea.vmem [#allocation11], %s759
        // Predicated region
        $region73: #{tpu_custom_call.1} parent=51 // pred_check
          %p761 = pneg %p245
        $region74: #{tpu_custom_call.1} parent=51 // pred_check_branch
          %763 = sbr.rel (%p761) target = $region76
        $region75: #{tpu_custom_call.1} parent=51 // pred_region
          %s765 = ssub.s32 128, 128
          %766 = vsyncadd %s757, %s765
          %s767 = smul.addr %s29, 2
          %s768 = sadd.s32 %s30, %s767
          %s769 = smul.addr %s768, 128
          %s770 = scalar_lea.hbm %s8, %s769
          %s772 = sshll.u32 %s760, 4
          %s773 = int_to_ptr.vmem [resolvable:$true] %s772
          %775 = dma.vmem_to_hbm [thread:$0]  %s773, 128, %s770, %s757
        $region76: #{tpu_custom_call.1} parent=51 // pred_fallthru
          _
      $region52: #{tpu_custom_call.1} parent=5 // pred_fallthru
        _
      %p776 = scmp.le.s32.totalorder 2, %s20
      // Predicated region
      $region77: #{tpu_custom_call.1} parent=5 // pred_check
        %p777 = pneg %p776
      $region78: #{tpu_custom_call.1} parent=5 // pred_check_branch
        %779 = sbr.rel (%p777) target = $region80
      $region79: #{tpu_custom_call.1} parent=5 // pred_region
        %s780 = ssub.s32 %s20, 2
        // Predicated region
        $region81: #{tpu_custom_call.1} parent=79 // pred_check
          %p781 = pneg %p251
        $region82: #{tpu_custom_call.1} parent=79 // pred_check_branch
          %783 = sbr.rel (%p781) target = $region84
        $region83: #{tpu_custom_call.1} parent=79 // pred_region
          %s784 = sand.u32 %s236, 1
          %s785 = scalar_lea.sflag [#allocation4], %s784
          %s786 = sand.u32 %s236, 1
          %s787 = smul.addr %s786, 8
          %s788 = scalar_lea.vmem [#allocation11], %s787
          %789 = dma.done %s785, 128
        $region84: #{tpu_custom_call.1} parent=79 // pred_fallthru
          _
      $region80: #{tpu_custom_call.1} parent=5 // pred_fallthru
        _
    $region6: #{tpu_custom_call.1} parent=1 // loop_footer
      %s24 = sadd.s32 1, %s20
    $region7: #{tpu_custom_call.1} parent=1 // loop_footer_branch
      %19 = sbr.rel target = $region3
    $region8: #{tpu_custom_call.1} parent=1 // loop_exit
      _
    %790 = vsyncpa [#allocation3], 1
    %s791 = scalar_lea.sflag [#allocation3], 1
    %792 = vsyncpa %s791, 1
    %793 = vsyncpa [#allocation6], 1
    %794 = vsyncpa [#allocation9], 1
    %795 = vsyncpa [#allocation4], 1
    %s796 = scalar_lea.sflag [#allocation4], 1
    %797 = vsyncpa %s796, 1

// kernel: tpu_custom_call.1
$region0: #{tpu_custom_call.1}
  #allocation0 [shape = 'u32[]', space=smem, size = 0x4, offset = 0x4, fixed_abs, tag = 'smem constant byte address 0x4 - core index']
  #allocation1 [shape = 'u32[144,128]{1,0:T(1,128)}', space=vmem, size = 0x12000, scoped, tag = 'internal scratch']
  %s0 = inlined_call_operand.hbm [shape: bf16[8,128], index: 0, kind: input, shape index: {}]
  %s1 = inlined_call_operand.hbm [shape: bf16[8,128], index: 1, kind: input, shape index: {}]
  %s2 = inlined_call_operand.hbm [shape: bf16[128,128], index: 2, kind: input, shape index: {}]
  %s3 = inlined_call_operand.vmem [shape: f32[1,128], index: 3, kind: input, shape index: {}]
  %s4 = inlined_call_operand.hbm [shape: bf16[128,128], index: 4, kind: input, shape index: {}]
  %s5 = inlined_call_operand.vmem [shape: f32[1,128], index: 5, kind: input, shape index: {}]
  %s6 = inlined_call_operand.hbm [shape: bf16[128,256], index: 6, kind: input, shape index: {}]
  %s7 = inlined_call_operand.vmem [shape: f32[1,256], index: 7, kind: input, shape index: {}]
  %s8 = inlined_call_operand.hbm [shape: f32[8,256], index: 8, kind: output, shape index: {}]
  %s9 = sld [smem:[#allocation0]]
  $region85: #{tpu_custom_call.1} parent=0
    _
  %s11 = ssub.s32 1, %s9
  %s12 = scalar_select 0, %s11, %s9
  $region1: #{tpu_custom_call.1} parent=0
    #allocation2 [shape = 'u8[2048]{0}', space=vmem, size = 0x800, scoped, tag = 'input window, operand 0, single buffered']
    #allocation3 [shape = 's32[2]{0}', space=sflag, size = 0x8, scoped, tag = 'scoped memory for tpu_custom_call.1']
    #allocation4 [shape = 's32[2]{0}', space=sflag, size = 0x8, scoped, tag = 'scoped memory for tpu_custom_call.1']
    #allocation5 [shape = 'u8[2048]{0}', space=vmem, size = 0x800, scoped, tag = 'input window, operand 1, single buffered']
    #allocation6 [shape = 's32[1]{0}', space=sflag, size = 0x4, scoped, tag = 'scoped memory for tpu_custom_call.1']
    #allocation7 [shape = 'u8[32768]{0}', space=vmem, size = 0x8000, scoped, tag = 'input window, operand 2, single buffered']
    #allocation8 [shape = 'u8[32768]{0}', space=vmem, size = 0x8000, scoped, tag = 'input window, operand 4, single buffered']
    #allocation9 [shape = 's32[1]{0}', space=sflag, size = 0x4, scoped, tag = 'scoped memory for tpu_custom_call.1']
    #allocation10 [shape = 'u8[65536]{0}', space=vmem, size = 0x10000, scoped, tag = 'input window, operand 6']
    #allocation11 [shape = 'u8[8192]{0}', space=vmem, size = 0x2000, scoped, tag = 'output window, operand 0']
    %13 = vsyncpa [#allocation3], 0
    %14 = vsyncpa [#allocation6], 0
    %15 = vsyncpa [#allocation9], 0
    %16 = vsyncpa [#allocation4], 0
    %s17 = scalar_lea.sflag [#allocation4], 1
    %18 = vsyncpa %s17, 0
    loop: start=0, step=1, limit=4
    $region2: #{tpu_custom_call.1} parent=1 // loop_pre_header
      _
    $region3: #{tpu_custom_call.1} parent=1 // loop_header
      %s20 = sphi 0, %s24
      %p21 = scmp.ge.s32.totalorder %s20, 4
      %s27 = sphi 0, %s39
      %s28 = sphi 0, %s35
      %s29 = sphi 0, %s27
      %s30 = sphi 0, %s28
      %s31 = sphi 0, %s29
      %s32 = sphi 0, %s30
      %s42 = sphi 0, %s44
      %s45 = sphi 0, %s42
      %s46 = sphi 0, %s45
      %s62 = sphi 0, %s46
      %s68 = sphi 0, %s70
      %s71 = sphi 0, %s68
      %s72 = sphi 0, %s71
      %s88 = sphi 0, %s72
      %s92 = sphi 0, %s92
      %s94 = sphi 0, %s92
      %s95 = sphi 0, %s94
      %s109 = sphi 0, %s95
      %s113 = sphi 0, %s113
      %s115 = sphi 0, %s113
      %s116 = sphi 0, %s115
      %s130 = sphi 0, %s116
      %s134 = sphi 0, %s134
      %s136 = sphi 0, %s134
      %s137 = sphi 0, %s136
      %s151 = sphi 0, %s137
      %s155 = sphi 0, %s155
      %s157 = sphi 0, %s155
      %s158 = sphi 0, %s157
      %s172 = sphi 0, %s158
      %s178 = sphi 0, %s180
      %s181 = sphi 0, %s178
      %s182 = sphi 0, %s181
      %s198 = sphi 0, %s182
      %s204 = sphi 0, %s206
      %s207 = sphi 0, %s204
      %s208 = sphi 0, %s207
      %s224 = sphi 0, %s208
      %s232 = sphi 0, %s234
      %s235 = sphi 0, %s232
      %s236 = sphi 0, %s235
      %s252 = sphi 0, %s236
    $region4: #{tpu_custom_call.1} parent=1 // loop_header_branch
      %23 = sbr.rel (%p21) target = $region8
    $region5: #{tpu_custom_call.1} parent=1 // loop_body
      %s25 = ssub.s32 %s20, 1
      %s26 = ssub.s32 %s20, 2
      %s33 = sadd.s32 1, %s28
      %p34 = scmp.ge.s32.totalorder %s33, 2
      %s35 = scalar_select %p34, 0, %s33
      %s36 = sadd.s32 1, %s27
      %s37 = scalar_select %p34, %s36, %s27
      %p38 = scmp.ge.s32.totalorder %s37, 1
      %s39 = scalar_select %p38, 0, %s37
      %s40 = ssub.s32 %s27, %s39
      %p41 = scmp.eq.s32.totalorder %s40, 0
      %s43 = sadd.s32 %s42, 1
      %s44 = scalar_select %p41, %s42, %s43
      %p47 = pneg %p41
      %p48 = scmp.eq.s32.totalorder %s20, 1
      %p49 = por %p47, %p48
      %p50 = scmp.ne.s32.totalorder %s42, %s45
      %p51 = scmp.eq.s32.totalorder %s20, 0
      %p52 = por %p50, %p51
      %p53 = scmp.ne.s32.totalorder %s42, %s45
      %p54 = scmp.eq.s32.totalorder %s25, 1
      %p55 = por %p53, %p54
      %p56 = scmp.ne.s32.totalorder %s45, %s46
      %p57 = scmp.eq.s32.totalorder %s25, 0
      %p58 = por %p56, %p57
      %p59 = scmp.ne.s32.totalorder %s45, %s46
      %p60 = scmp.eq.s32.totalorder %s26, 1
      %p61 = por %p59, %p60
      %p63 = scmp.ne.s32.totalorder %s46, %s62
      %p64 = scmp.eq.s32.totalorder %s26, 0
      %p65 = por %p63, %p64
      %s66 = ssub.s32 %s27, %s39
      %p67 = scmp.eq.s32.totalorder %s66, 0
      %s69 = sadd.s32 %s68, 1
      %s70 = scalar_select %p67, %s68, %s69
      %p73 = pneg %p67
      %p74 = scmp.eq.s32.totalorder %s20, 1
      %p75 = por %p73, %p74
      %p76 = scmp.ne.s32.totalorder %s68, %s71
      %p77 = scmp.eq.s32.totalorder %s20, 0
      %p78 = por %p76, %p77
      %p79 = scmp.ne.s32.totalorder %s68, %s71
      %p80 = scmp.eq.s32.totalorder %s25, 1
      %p81 = por %p79, %p80
      %p82 = scmp.ne.s32.totalorder %s71, %s72
      %p83 = scmp.eq.s32.totalorder %s25, 0
      %p84 = por %p82, %p83
      %p85 = scmp.ne.s32.totalorder %s71, %s72
      %p86 = scmp.eq.s32.totalorder %s26, 1
      %p87 = por %p85, %p86
      %p89 = scmp.ne.s32.totalorder %s72, %s88
      %p90 = scmp.eq.s32.totalorder %s26, 0
      %p91 = por %p89, %p90
      %s93 = sadd.s32 %s92, 1
      %p96 = scmp.eq.s32.totalorder %s20, 1
      %p97 = scmp.ne.s32.totalorder %s92, %s94
      %p98 = scmp.eq.s32.totalorder %s20, 0
      %p99 = por %p97, %p98
      %p100 = scmp.ne.s32.totalorder %s92, %s94
      %p101 = scmp.eq.s32.totalorder %s25, 1
      %p102 = por %p100, %p101
      %p103 = scmp.ne.s32.totalorder %s94, %s95
      %p104 = scmp.eq.s32.totalorder %s25, 0
      %p105 = por %p103, %p104
      %p106 = scmp.ne.s32.totalorder %s94, %s95
      %p107 = scmp.eq.s32.totalorder %s26, 1
      %p108 = por %p106, %p107
      %p110 = scmp.ne.s32.totalorder %s95, %s109
      %p111 = scmp.eq.s32.totalorder %s26, 0
      %p112 = por %p110, %p111
      %s114 = sadd.s32 %s113, 1
      %p117 = scmp.eq.s32.totalorder %s20, 1
      %p118 = scmp.ne.s32.totalorder %s113, %s115
      %p119 = scmp.eq.s32.totalorder %s20, 0
      %p120 = por %p118, %p119
      %p121 = scmp.ne.s32.totalorder %s113, %s115
      %p122 = scmp.eq.s32.totalorder %s25, 1
      %p123 = por %p121, %p122
      %p124 = scmp.ne.s32.totalorder %s115, %s116
      %p125 = scmp.eq.s32.totalorder %s25, 0
      %p126 = por %p124, %p125
      %p127 = scmp.ne.s32.totalorder %s115, %s116
      %p128 = scmp.eq.s32.totalorder %s26, 1
      %p129 = por %p127, %p128
      %p131 = scmp.ne.s32.totalorder %s116, %s130
      %p132 = scmp.eq.s32.totalorder %s26, 0
      %p133 = por %p131, %p132
      %s135 = sadd.s32 %s134, 1
      %p138 = scmp.eq.s32.totalorder %s20, 1
      %p139 = scmp.ne.s32.totalorder %s134, %s136
      %p140 = scmp.eq.s32.totalorder %s20, 0
      %p141 = por %p139, %p140
      %p142 = scmp.ne.s32.totalorder %s134, %s136
      %p143 = scmp.eq.s32.totalorder %s25, 1
      %p144 = por %p142, %p143
      %p145 = scmp.ne.s32.totalorder %s136, %s137
      %p146 = scmp.eq.s32.totalorder %s25, 0
      %p147 = por %p145, %p146
      %p148 = scmp.ne.s32.totalorder %s136, %s137
      %p149 = scmp.eq.s32.totalorder %s26, 1
      %p150 = por %p148, %p149
      %p152 = scmp.ne.s32.totalorder %s137, %s151
      %p153 = scmp.eq.s32.totalorder %s26, 0
      %p154 = por %p152, %p153
      %s156 = sadd.s32 %s155, 1
      %p159 = scmp.eq.s32.totalorder %s20, 1
      %p160 = scmp.ne.s32.totalorder %s155, %s157
      %p161 = scmp.eq.s32.totalorder %s20, 0
      %p162 = por %p160, %p161
      %p163 = scmp.ne.s32.totalorder %s155, %s157
      %p164 = scmp.eq.s32.totalorder %s25, 1
      %p165 = por %p163, %p164
      %p166 = scmp.ne.s32.totalorder %s157, %s158
      %p167 = scmp.eq.s32.totalorder %s25, 0
      %p168 = por %p166, %p167
      %p169 = scmp.ne.s32.totalorder %s157, %s158
      %p170 = scmp.eq.s32.totalorder %s26, 1
      %p171 = por %p169, %p170
      %p173 = scmp.ne.s32.totalorder %s158, %s172
      %p174 = scmp.eq.s32.totalorder %s26, 0
      %p175 = por %p173, %p174
      %s176 = ssub.s32 %s28, %s35
      %p177 = scmp.eq.s32.totalorder %s176, 0
      %s179 = sadd.s32 %s178, 1
      %s180 = scalar_select %p177, %s178, %s179
      %p183 = pneg %p177
      %p184 = scmp.eq.s32.totalorder %s20, 1
      %p185 = por %p183, %p184
      %p186 = scmp.ne.s32.totalorder %s178, %s181
      %p187 = scmp.eq.s32.totalorder %s20, 0
      %p188 = por %p186, %p187
      %p189 = scmp.ne.s32.totalorder %s178, %s181
      %p190 = scmp.eq.s32.totalorder %s25, 1
      %p191 = por %p189, %p190
      %p192 = scmp.ne.s32.totalorder %s181, %s182
      %p193 = scmp.eq.s32.totalorder %s25, 0
      %p194 = por %p192, %p193
      %p195 = scmp.ne.s32.totalorder %s181, %s182
      %p196 = scmp.eq.s32.totalorder %s26, 1
      %p197 = por %p195, %p196
      %p199 = scmp.ne.s32.totalorder %s182, %s198
      %p200 = scmp.eq.s32.totalorder %s26, 0
      %p201 = por %p199, %p200
      %s202 = ssub.s32 %s28, %s35
      %p203 = scmp.eq.s32.totalorder %s202, 0
      %s205 = sadd.s32 %s204, 1
      %s206 = scalar_select %p203, %s204, %s205
      %p209 = pneg %p203
      %p210 = scmp.eq.s32.totalorder %s20, 1
      %p211 = por %p209, %p210
      %p212 = scmp.ne.s32.totalorder %s204, %s207
      %p213 = scmp.eq.s32.totalorder %s20, 0
      %p214 = por %p212, %p213
      %p215 = scmp.ne.s32.totalorder %s204, %s207
      %p216 = scmp.eq.s32.totalorder %s25, 1
      %p217 = por %p215, %p216
      %p218 = scmp.ne.s32.totalorder %s207, %s208
      %p219 = scmp.eq.s32.totalorder %s25, 0
      %p220 = por %p218, %p219
      %p221 = scmp.ne.s32.totalorder %s207, %s208
      %p222 = scmp.eq.s32.totalorder %s26, 1
      %p223 = por %p221, %p222
      %p225 = scmp.ne.s32.totalorder %s208, %s224
      %p226 = scmp.eq.s32.totalorder %s26, 0
      %p227 = por %p225, %p226
      %s228 = ssub.s32 %s27, %s39
      %s229 = ssub.s32 %s28, %s35
      %s230 = sor.u32 %s228, %s229
      %p231 = scmp.eq.s32.totalorder %s230, 0
      %s233 = sadd.s32 %s232, 1
      %s234 = scalar_select %p231, %s232, %s233
      %p237 = pneg %p231
      %p238 = scmp.eq.s32.totalorder %s20, 1
      %p239 = por %p237, %p238
      %p240 = scmp.ne.s32.totalorder %s232, %s235
      %p241 = scmp.eq.s32.totalorder %s20, 0
      %p242 = por %p240, %p241
      %p243 = scmp.ne.s32.totalorder %s232, %s235
      %p244 = scmp.eq.s32.totalorder %s25, 1
      %p245 = por %p243, %p244
      %p246 = scmp.ne.s32.totalorder %s235, %s236
      %p247 = scmp.eq.s32.totalorder %s25, 0
      %p248 = por %p246, %p247
      %p249 = scmp.ne.s32.totalorder %s235, %s236
      %p250 = scmp.eq.s32.totalorder %s26, 1
      %p251 = por %p249, %p250
      %p253 = scmp.ne.s32.totalorder %s236, %s252
      %p254 = scmp.eq.s32.totalorder %s26, 0
      %p255 = por %p253, %p254
      %p256 = scmp.le.s32.totalorder 1, %s20
      %p257 = scmp.lt.s32.totalorder %s20, 3
      %p258 = pnand %p256, %p257
      %p259 = pneg %p258
      // Predicated region
      $region9: #{tpu_custom_call.1} parent=5 // pred_check
        _
      $region10: #{tpu_custom_call.1} parent=5 // pred_check_branch
        %261 = sbr.rel (%p258) target = $region12
      $region11: #{tpu_custom_call.1} parent=5 // pred_region
        %s262 = ssub.s32 %s20, 1
        // Predicated region
        $region13: #{tpu_custom_call.1} parent=11 // pred_check
          %p263 = pneg %p58
        $region14: #{tpu_custom_call.1} parent=11 // pred_check_branch
          %265 = sbr.rel (%p263) target = $region16
        $region15: #{tpu_custom_call.1} parent=11 // pred_region
          %s267 = ssub.s32 64, 64
          %268 = vsyncadd [#allocation3], %s267
          %s269 = smul.addr %s29, 64
          %s270 = scalar_lea.hbm %s0, %s269
          %s272 = sshll.u32 [#allocation2], 4
          %s273 = int_to_ptr.vmem [resolvable:$true] %s272
          %275 = dma.hbm_to_vmem [thread:$0]  %s270, 64, %s273, [#allocation3]
        $region16: #{tpu_custom_call.1} parent=11 // pred_fallthru
          _
        // Predicated region
        $region17: #{tpu_custom_call.1} parent=11 // pred_check
          %p276 = pneg %p84
        $region18: #{tpu_custom_call.1} parent=11 // pred_check_branch
          %278 = sbr.rel (%p276) target = $region20
        $region19: #{tpu_custom_call.1} parent=11 // pred_region
          %s280 = ssub.s32 64, 64
          %281 = vsyncadd [#allocation6], %s280
          %s282 = smul.addr %s29, 64
          %s283 = scalar_lea.hbm %s1, %s282
          %s285 = sshll.u32 [#allocation5], 4
          %s286 = int_to_ptr.vmem [resolvable:$true] %s285
          %288 = dma.hbm_to_vmem [thread:$0]  %s283, 64, %s286, [#allocation6]
        $region20: #{tpu_custom_call.1} parent=11 // pred_fallthru
          _
        // Predicated region
        $region21: #{tpu_custom_call.1} parent=11 // pred_check
          %p289 = pneg %p105
        $region22: #{tpu_custom_call.1} parent=11 // pred_check_branch
          %291 = sbr.rel (%p289) target = $region24
        $region23: #{tpu_custom_call.1} parent=11 // pred_region
          %s293 = ssub.s32 1024, 1024
          %294 = vsyncadd [#allocation6], %s293
          %s295 = sshll.u32 [#allocation7], 4
          %s296 = int_to_ptr.vmem [resolvable:$true] %s295
          %301 = dma.hbm_to_vmem [thread:$0]  %s2, 1024, %s296, [#allocation6], 64, 64, 4
        $region24: #{tpu_custom_call.1} parent=11 // pred_fallthru
          _
        // Predicated region
        $region25: #{tpu_custom_call.1} parent=11 // pred_check
          %p302 = pneg %p126
        $region26: #{tpu_custom_call.1} parent=11 // pred_check_branch
          %304 = sbr.rel (%p302) target = $region28
        $region27: #{tpu_custom_call.1} parent=11 // pred_region
          _
        $region28: #{tpu_custom_call.1} parent=11 // pred_fallthru
          _
        // Predicated region
        $region29: #{tpu_custom_call.1} parent=11 // pred_check
          %p305 = pneg %p147
        $region30: #{tpu_custom_call.1} parent=11 // pred_check_branch
          %307 = sbr.rel (%p305) target = $region32
        $region31: #{tpu_custom_call.1} parent=11 // pred_region
          %s309 = ssub.s32 1024, 1024
          %310 = vsyncadd [#allocation9], %s309
          %s311 = sshll.u32 [#allocation8], 4
          %s312 = int_to_ptr.vmem [resolvable:$true] %s311
          %317 = dma.hbm_to_vmem [thread:$0]  %s4, 1024, %s312, [#allocation9], 64, 64, 4
        $region32: #{tpu_custom_call.1} parent=11 // pred_fallthru
          _
        // Predicated region
        $region33: #{tpu_custom_call.1} parent=11 // pred_check
          %p318 = pneg %p168
        $region34: #{tpu_custom_call.1} parent=11 // pred_check_branch
          %320 = sbr.rel (%p318) target = $region36
        $region35: #{tpu_custom_call.1} parent=11 // pred_region
          _
        $region36: #{tpu_custom_call.1} parent=11 // pred_fallthru
          _
      $region12: #{tpu_custom_call.1} parent=5 // pred_fallthru
        _
      %p321 = scmp.lt.s32.totalorder %s20, 2
      // Predicated region
      $region37: #{tpu_custom_call.1} parent=5 // pred_check
        %p322 = pneg %p321
      $region38: #{tpu_custom_call.1} parent=5 // pred_check_branch
        %324 = sbr.rel (%p322) target = $region40
      $region39: #{tpu_custom_call.1} parent=5 // pred_region
        // Predicated region
        $region41: #{tpu_custom_call.1} parent=39 // pred_check
          %p325 = pneg %p188
        $region42: #{tpu_custom_call.1} parent=39 // pred_check_branch
          %327 = sbr.rel (%p325) target = $region44
        $region43: #{tpu_custom_call.1} parent=39 // pred_region
          %s328 = sand.u32 %s20, 1
          %s329 = scalar_lea.sflag [#allocation3], %s328
          %s330 = sand.u32 %s178, 1
          %s331 = smul.addr %s330, 64
          %s332 = scalar_lea.vmem [#allocation10], %s331
          %s334 = ssub.s32 1024, 1024
          %335 = vsyncadd %s329, %s334
          %s336 = smul.addr %s28, 64
          %s337 = scalar_lea.hbm %s6, %s336
          %s338 = sshll.u32 %s332, 4
          %s339 = int_to_ptr.vmem [resolvable:$true] %s338
          %344 = dma.hbm_to_vmem [thread:$0]  %s337, 1024, %s339, %s329, 128, 64, 4
        $region44: #{tpu_custom_call.1} parent=39 // pred_fallthru
          _
        // Predicated region
        $region45: #{tpu_custom_call.1} parent=39 // pred_check
          %p345 = pneg %p214
        $region46: #{tpu_custom_call.1} parent=39 // pred_check_branch
          %347 = sbr.rel (%p345) target = $region48
        $region47: #{tpu_custom_call.1} parent=39 // pred_region
          %p348 = scmp.lt.s32.totalorder %s28, 1
          %s349 = scalar_select %p348, %s28, 1
          %s350 = scalar_lea.vmem %s7, %s349
        $region48: #{tpu_custom_call.1} parent=39 // pred_fallthru
          _
      $region40: #{tpu_custom_call.1} parent=5 // pred_fallthru
        _
      %p351 = scmp.le.s32.totalorder 1, %s20
      %p352 = scmp.lt.s32.totalorder %s20, 3
      %p353 = pnand %p351, %p352
      %p354 = pneg %p353
      // Predicated region
      $region49: #{tpu_custom_call.1} parent=5 // pred_check
        _
      $region50: #{tpu_custom_call.1} parent=5 // pred_check_branch
        %356 = sbr.rel (%p353) target = $region52
      $region51: #{tpu_custom_call.1} parent=5 // pred_region
        %s357 = ssub.s32 %s20, 1
        // Predicated region
        $region53: #{tpu_custom_call.1} parent=51 // pred_check
          %p358 = pneg %p58
        $region54: #{tpu_custom_call.1} parent=51 // pred_check_branch
          %360 = sbr.rel (%p358) target = $region56
        $region55: #{tpu_custom_call.1} parent=51 // pred_region
          %361 = dma.done [#allocation3], 64
        $region56: #{tpu_custom_call.1} parent=51 // pred_fallthru
          _
        // Predicated region
        $region57: #{tpu_custom_call.1} parent=51 // pred_check
          %p362 = pneg %p84
        $region58: #{tpu_custom_call.1} parent=51 // pred_check_branch
          %364 = sbr.rel (%p362) target = $region60
        $region59: #{tpu_custom_call.1} parent=51 // pred_region
          %365 = dma.done [#allocation6], 64
        $region60: #{tpu_custom_call.1} parent=51 // pred_fallthru
          _
        // Predicated region
        $region61: #{tpu_custom_call.1} parent=51 // pred_check
          %p366 = pneg %p105
        $region62: #{tpu_custom_call.1} parent=51 // pred_check_branch
          %368 = sbr.rel (%p366) target = $region64
        $region63: #{tpu_custom_call.1} parent=51 // pred_region
          %369 = dma.done [#allocation6], 1024
        $region64: #{tpu_custom_call.1} parent=51 // pred_fallthru
          _
        // Predicated region
        $region65: #{tpu_custom_call.1} parent=51 // pred_check
          %p370 = pneg %p147
        $region66: #{tpu_custom_call.1} parent=51 // pred_check_branch
          %372 = sbr.rel (%p370) target = $region68
        $region67: #{tpu_custom_call.1} parent=51 // pred_region
          %373 = dma.done [#allocation9], 1024
        $region68: #{tpu_custom_call.1} parent=51 // pred_fallthru
          _
        %s374 = sand.u32 %s25, 1
        %s375 = scalar_lea.sflag [#allocation3], %s374
        %s376 = sand.u32 %s181, 1
        %s377 = smul.addr %s376, 64
        %s378 = scalar_lea.vmem [#allocation10], %s377
        // Predicated region
        $region69: #{tpu_custom_call.1} parent=51 // pred_check
          %p379 = pneg %p194
        $region70: #{tpu_custom_call.1} parent=51 // pred_check_branch
          %381 = sbr.rel (%p379) target = $region72
        $region71: #{tpu_custom_call.1} parent=51 // pred_region
          %382 = dma.done %s375, 1024
        $region72: #{tpu_custom_call.1} parent=51 // pred_fallthru
          _
        %p383 = pneg %p58
        %p384 = pneg %p55
        %p385 = pneg %p84
        %p386 = pneg %p81
        %p387 = pneg %p105
        %p388 = pneg %p102
        %p389 = pneg %p126
        %p390 = pneg %p123
        %p391 = pneg %p147
        %p392 = pneg %p144
        %p393 = pneg %p168
        %p394 = pneg %p165
        %s395 = sand.u32 %s25, 1
        %s396 = scalar_lea.sflag [#allocation3], %s395
        %s397 = sand.u32 %s181, 1
        %s398 = smul.addr %s397, 64
        %s399 = scalar_lea.vmem [#allocation10], %s398
        %p400 = pneg %p194
        %p401 = pneg %p191
        %p402 = scmp.lt.s32.totalorder %s30, 1
        %s403 = scalar_select %p402, %s30, 1
        %s404 = scalar_lea.vmem %s7, %s403
        %p405 = pneg %p220
        %p406 = pneg %p217
        %p407 = pneg %p248
        %p408 = pneg %p245
        %s409 = sand.u32 %s235, 1
        %s410 = scalar_lea.sflag [#allocation4], %s409
        %s411 = sand.u32 %s235, 1
        %s412 = smul.addr %s411, 8
        %s413 = scalar_lea.vmem [#allocation11], %s412
        %p414 = scmp.lt.s32.totalorder %s30, 1
        %s415 = scalar_select %p414, %s30, 1
        %s416 = scalar_lea.vmem %s7, %s415
        %v418 = vld [vmem:[#allocation2] sm:$0xf]
        %v419 = vld [vmem:[#allocation7] sm:$0xf]
        %v420 = vld [vmem:[#allocation7 + $0x4] sm:$0xf]
        %v421 = vld [vmem:[#allocation7 + $0x8] sm:$0xf]
        %v422 = vld [vmem:[#allocation7 + $0xc] sm:$0xf]
        %v423 = vld [vmem:[#allocation7 + $0x10] sm:$0xf]
        %v424 = vld [vmem:[#allocation7 + $0x14] sm:$0xf]
        %v425 = vld [vmem:[#allocation7 + $0x18] sm:$0xf]
        %v426 = vld [vmem:[#allocation7 + $0x1c] sm:$0xf]
        %v427 = vld [vmem:[#allocation7 + $0x20] sm:$0xf]
        %v428 = vld [vmem:[#allocation7 + $0x24] sm:$0xf]
        %v429 = vld [vmem:[#allocation7 + $0x28] sm:$0xf]
        %v430 = vld [vmem:[#allocation7 + $0x2c] sm:$0xf]
        %v431 = vld [vmem:[#allocation7 + $0x30] sm:$0xf]
        %v432 = vld [vmem:[#allocation7 + $0x34] sm:$0xf]
        %v433 = vld [vmem:[#allocation7 + $0x38] sm:$0xf]
        %v434 = vld [vmem:[#allocation7 + $0x3c] sm:$0xf]
        %v435 = vld [vmem:[%s3] sm:$0x1]
        %v437 = vlaneseq
        %v438 = vshrl.u32 %v437, 7
        %v439 = vsub.s32 0, %v438
        %v440 = vrot.slane %v435, %v439
        %v458 = vunpack.c.l.b16 %v419
        %v459 = vunpack.c.l.b16 %v420
        %v460 = vunpack.c.l.b16 %v421
        %v461 = vunpack.c.l.b16 %v422
        %v462 = vunpack.c.l.b16 %v423
        %v463 = vunpack.c.l.b16 %v424
        %v464 = vunpack.c.l.b16 %v425
        %v465 = vunpack.c.l.b16 %v426
        %v466 = vunpack.c.l.b16 %v427
        %v467 = vunpack.c.l.b16 %v428
        %v468 = vunpack.c.l.b16 %v429
        %v469 = vunpack.c.l.b16 %v430
        %v470 = vunpack.c.l.b16 %v431
        %v471 = vunpack.c.l.b16 %v432
        %v472 = vunpack.c.l.b16 %v433
        %v473 = vunpack.c.l.b16 %v434
        %v474 = vpack.c.b16 %v459, %v458
        %v475 = vpack.c.b16 %v461, %v460
        %v476 = vpack.c.b16 %v463, %v462
        %v477 = vpack.c.b16 %v465, %v464
        %v478 = vpack.c.b16 %v467, %v466
        %v479 = vpack.c.b16 %v469, %v468
        %v480 = vpack.c.b16 %v471, %v470
        %v481 = vpack.c.b16 %v473, %v472
        %490 = vmatprep.subr.bf16.mxu0 0
        %491 = vmatpush1.bf16.msra.mxu0 %v474
        %492 = vmatprep.subr.bf16.mxu0 0
        %493 = vmatpush1.bf16.msra.mxu0 %v475
        %494 = vmatprep.subr.bf16.mxu0 0
        %495 = vmatpush1.bf16.msra.mxu0 %v476
        %496 = vmatprep.subr.bf16.mxu0 0
        %497 = vmatpush1.bf16.msra.mxu0 %v477
        %498 = vmatprep.subr.bf16.mxu0 0
        %499 = vmatpush1.bf16.msra.mxu0 %v478
        %500 = vmatprep.subr.bf16.mxu0 0
        %501 = vmatpush1.bf16.msra.mxu0 %v479
        %502 = vmatprep.subr.bf16.mxu0 0
        %503 = vmatpush1.bf16.msra.mxu0 %v480
        %504 = vmatprep.subr.bf16.mxu0 0
        %505 = vmatpush1.bf16.msra.mxu0 %v481
        %506 = vmatprep.subr.bf16.mxu0 0
        %507 = vmatpush1.bf16.msra.mxu0 0
        %508 = vmatprep.subr.bf16.mxu0 0
        %509 = vmatpush1.bf16.msra.mxu0 0
        %510 = vmatprep.subr.bf16.mxu0 0
        %511 = vmatpush1.bf16.msra.mxu0 0
        %512 = vmatprep.subr.bf16.mxu0 0
        %513 = vmatpush1.bf16.msra.mxu0 0
        %514 = vmatprep.subr.bf16.mxu0 0
        %515 = vmatpush1.bf16.msra.mxu0 0
        %516 = vmatprep.subr.bf16.mxu0 0
        %517 = vmatpush1.bf16.msra.mxu0 0
        %518 = vmatprep.subr.bf16.mxu0 0
        %519 = vmatpush1.bf16.msra.mxu0 0
        %520 = vmatprep.subr.bf16.mxu0 0
        %521 = vmatpush1.bf16.msra.mxu0 0
        %522 = vmatprep.mubr.bf16.mxu0 0
        %523 = vmatmul.mubr.bf16.gmra.mrb[0].mxu0 %v418
        %v524 = vpop.f32.mrb[0].mxu0
        %v525 = vadd.f32 %v440, %v524
        %v526 = vpop.f32.mrb[0].mxu0
        %v527 = vpop.f32.mrb[0].mxu0
        %v528 = vpop.f32.mrb[0].mxu0
        %529 = vdwg.mxu0
        %v530 = vld [vmem:[#allocation5] sm:$0xf]
        %v531 = vld [vmem:[#allocation8] sm:$0xf]
        %v532 = vld [vmem:[#allocation8 + $0x4] sm:$0xf]
        %v533 = vld [vmem:[#allocation8 + $0x8] sm:$0xf]
        %v534 = vld [vmem:[#allocation8 + $0xc] sm:$0xf]
        %v535 = vld [vmem:[#allocation8 + $0x10] sm:$0xf]
        %v536 = vld [vmem:[#allocation8 + $0x14] sm:$0xf]
        %v537 = vld [vmem:[#allocation8 + $0x18] sm:$0xf]
        %v538 = vld [vmem:[#allocation8 + $0x1c] sm:$0xf]
        %v539 = vld [vmem:[#allocation8 + $0x20] sm:$0xf]
        %v540 = vld [vmem:[#allocation8 + $0x24] sm:$0xf]
        %v541 = vld [vmem:[#allocation8 + $0x28] sm:$0xf]
        %v542 = vld [vmem:[#allocation8 + $0x2c] sm:$0xf]
        %v543 = vld [vmem:[#allocation8 + $0x30] sm:$0xf]
        %v544 = vld [vmem:[#allocation8 + $0x34] sm:$0xf]
        %v545 = vld [vmem:[#allocation8 + $0x38] sm:$0xf]
        %v546 = vld [vmem:[#allocation8 + $0x3c] sm:$0xf]
        %v547 = vld [vmem:[%s5] sm:$0x1]
        %v549 = vlaneseq
        %v550 = vshrl.u32 %v549, 7
        %v551 = vsub.s32 0, %v550
        %v552 = vrot.slane %v547, %v551
        %v570 = vunpack.c.l.b16 %v531
        %v571 = vunpack.c.l.b16 %v532
        %v572 = vunpack.c.l.b16 %v533
        %v573 = vunpack.c.l.b16 %v534
        %v574 = vunpack.c.l.b16 %v535
        %v575 = vunpack.c.l.b16 %v536
        %v576 = vunpack.c.l.b16 %v537
        %v577 = vunpack.c.l.b16 %v538
        %v578 = vunpack.c.l.b16 %v539
        %v579 = vunpack.c.l.b16 %v540
        %v580 = vunpack.c.l.b16 %v541
        %v581 = vunpack.c.l.b16 %v542
        %v582 = vunpack.c.l.b16 %v543
        %v583 = vunpack.c.l.b16 %v544
        %v584 = vunpack.c.l.b16 %v545
        %v585 = vunpack.c.l.b16 %v546
        %v586 = vpack.c.b16 %v571, %v570
        %v587 = vpack.c.b16 %v573, %v572
        %v588 = vpack.c.b16 %v575, %v574
        %v589 = vpack.c.b16 %v577, %v576
        %v590 = vpack.c.b16 %v579, %v578
        %v591 = vpack.c.b16 %v581, %v580
        %v592 = vpack.c.b16 %v583, %v582
        %v593 = vpack.c.b16 %v585, %v584
        %602 = vmatprep.subr.bf16.mxu0 0
        %603 = vmatpush1.bf16.msra.mxu0 %v586
        %604 = vmatprep.subr.bf16.mxu0 0
        %605 = vmatpush1.bf16.msra.mxu0 %v587
        %606 = vmatprep.subr.bf16.mxu0 0
        %607 = vmatpush1.bf16.msra.mxu0 %v588
        %608 = vmatprep.subr.bf16.mxu0 0
        %609 = vmatpush1.bf16.msra.mxu0 %v589
        %610 = vmatprep.subr.bf16.mxu0 0
        %611 = vmatpush1.bf16.msra.mxu0 %v590
        %612 = vmatprep.subr.bf16.mxu0 0
        %613 = vmatpush1.bf16.msra.mxu0 %v591
        %614 = vmatprep.subr.bf16.mxu0 0
        %615 = vmatpush1.bf16.msra.mxu0 %v592
        %616 = vmatprep.subr.bf16.mxu0 0
        %617 = vmatpush1.bf16.msra.mxu0 %v593
        %618 = vmatprep.subr.bf16.mxu0 0
        %619 = vmatpush1.bf16.msra.mxu0 0
        %620 = vmatprep.subr.bf16.mxu0 0
        %621 = vmatpush1.bf16.msra.mxu0 0
        %622 = vmatprep.subr.bf16.mxu0 0
        %623 = vmatpush1.bf16.msra.mxu0 0
        %624 = vmatprep.subr.bf16.mxu0 0
        %625 = vmatpush1.bf16.msra.mxu0 0
        %626 = vmatprep.subr.bf16.mxu0 0
        %627 = vmatpush1.bf16.msra.mxu0 0
        %628 = vmatprep.subr.bf16.mxu0 0
        %629 = vmatpush1.bf16.msra.mxu0 0
        %630 = vmatprep.subr.bf16.mxu0 0
        %631 = vmatpush1.bf16.msra.mxu0 0
        %632 = vmatprep.subr.bf16.mxu0 0
        %633 = vmatpush1.bf16.msra.mxu0 0
        %634 = vmatprep.mubr.bf16.mxu0 0
        %635 = vmatmul.mubr.bf16.gmra.mrb[0].mxu0 %v530
        %v636 = vpop.f32.mrb[0].mxu0
        %v637 = vadd.f32 %v552, %v636
        %v638 = vpop.f32.mrb[0].mxu0
        %v639 = vpop.f32.mrb[0].mxu0
        %v640 = vpop.f32.mrb[0].mxu0
        %641 = vdwg.mxu0
        %v642 = vmul.f32 %v525, %v637
        %v643 = vpack.c.bf16 %v642, %v642
        %v644 = vld [vmem:[%s378] sm:$0xf]
        %v645 = vld [vmem:[%s378 + $0x4] sm:$0xf]
        %v646 = vld [vmem:[%s378 + $0x8] sm:$0xf]
        %v647 = vld [vmem:[%s378 + $0xc] sm:$0xf]
        %v648 = vld [vmem:[%s378 + $0x10] sm:$0xf]
        %v649 = vld [vmem:[%s378 + $0x14] sm:$0xf]
        %v650 = vld [vmem:[%s378 + $0x18] sm:$0xf]
        %v651 = vld [vmem:[%s378 + $0x1c] sm:$0xf]
        %v652 = vld [vmem:[%s378 + $0x20] sm:$0xf]
        %v653 = vld [vmem:[%s378 + $0x24] sm:$0xf]
        %v654 = vld [vmem:[%s378 + $0x28] sm:$0xf]
        %v655 = vld [vmem:[%s378 + $0x2c] sm:$0xf]
        %v656 = vld [vmem:[%s378 + $0x30] sm:$0xf]
        %v657 = vld [vmem:[%s378 + $0x34] sm:$0xf]
        %v658 = vld [vmem:[%s378 + $0x38] sm:$0xf]
        %v659 = vld [vmem:[%s378 + $0x3c] sm:$0xf]
        %v660 = vld [vmem:[%s416] sm:$0x1]
        %v662 = vlaneseq
        %v663 = vshrl.u32 %v662, 7
        %v664 = vsub.s32 0, %v663
        %v665 = vrot.slane %v660, %v664
        %v683 = vunpack.c.l.b16 %v644
        %v684 = vunpack.c.l.b16 %v645
        %v685 = vunpack.c.l.b16 %v646
        %v686 = vunpack.c.l.b16 %v647
        %v687 = vunpack.c.l.b16 %v648
        %v688 = vunpack.c.l.b16 %v649
        %v689 = vunpack.c.l.b16 %v650
        %v690 = vunpack.c.l.b16 %v651
        %v691 = vunpack.c.l.b16 %v652
        %v692 = vunpack.c.l.b16 %v653
        %v693 = vunpack.c.l.b16 %v654
        %v694 = vunpack.c.l.b16 %v655
        %v695 = vunpack.c.l.b16 %v656
        %v696 = vunpack.c.l.b16 %v657
        %v697 = vunpack.c.l.b16 %v658
        %v698 = vunpack.c.l.b16 %v659
        %v699 = vpack.c.b16 %v684, %v683
        %v700 = vpack.c.b16 %v686, %v685
        %v701 = vpack.c.b16 %v688, %v687
        %v702 = vpack.c.b16 %v690, %v689
        %v703 = vpack.c.b16 %v692, %v691
        %v704 = vpack.c.b16 %v694, %v693
        %v705 = vpack.c.b16 %v696, %v695
        %v706 = vpack.c.b16 %v698, %v697
        %715 = vmatprep.subr.bf16.mxu0 0
        %716 = vmatpush1.bf16.msra.mxu0 %v699
        %717 = vmatprep.subr.bf16.mxu0 0
        %718 = vmatpush1.bf16.msra.mxu0 %v700
        %719 = vmatprep.subr.bf16.mxu0 0
        %720 = vmatpush1.bf16.msra.mxu0 %v701
        %721 = vmatprep.subr.bf16.mxu0 0
        %722 = vmatpush1.bf16.msra.mxu0 %v702
        %723 = vmatprep.subr.bf16.mxu0 0
        %724 = vmatpush1.bf16.msra.mxu0 %v703
        %725 = vmatprep.subr.bf16.mxu0 0
        %726 = vmatpush1.bf16.msra.mxu0 %v704
        %727 = vmatprep.subr.bf16.mxu0 0
        %728 = vmatpush1.bf16.msra.mxu0 %v705
        %729 = vmatprep.subr.bf16.mxu0 0
        %730 = vmatpush1.bf16.msra.mxu0 %v706
        %731 = vmatprep.subr.bf16.mxu0 0
        %732 = vmatpush1.bf16.msra.mxu0 0
        %733 = vmatprep.subr.bf16.mxu0 0
        %734 = vmatpush1.bf16.msra.mxu0 0
        %735 = vmatprep.subr.bf16.mxu0 0
        %736 = vmatpush1.bf16.msra.mxu0 0
        %737 = vmatprep.subr.bf16.mxu0 0
        %738 = vmatpush1.bf16.msra.mxu0 0
        %739 = vmatprep.subr.bf16.mxu0 0
        %740 = vmatpush1.bf16.msra.mxu0 0
        %741 = vmatprep.subr.bf16.mxu0 0
        %742 = vmatpush1.bf16.msra.mxu0 0
        %743 = vmatprep.subr.bf16.mxu0 0
        %744 = vmatpush1.bf16.msra.mxu0 0
        %745 = vmatprep.subr.bf16.mxu0 0
        %746 = vmatpush1.bf16.msra.mxu0 0
        %747 = vmatprep.mubr.bf16.mxu0 0
        %748 = vmatmul.mubr.bf16.gmra.mrb[0].mxu0 %v643
        %v749 = vpop.f32.mrb[0].mxu0
        %v750 = vadd.f32 %v665, %v749
        %v751 = vpop.f32.mrb[0].mxu0
        %v752 = vpop.f32.mrb[0].mxu0
        %v753 = vpop.f32.mrb[0].mxu0
        %754 = vdwg.mxu0
        %755 = vst [vmem:[%s413] sm:$0xff] %v750
        %s756 = sand.u32 %s235, 1
        %s757 = scalar_lea.sflag [#allocation4], %s756
        %s758 = sand.u32 %s235, 1
        %s759 = smul.addr %s758, 8
        %s760 = scalar_lea.vmem [#allocation11], %s759
        // Predicated region
        $region73: #{tpu_custom_call.1} parent=51 // pred_check
          %p761 = pneg %p245
        $region74: #{tpu_custom_call.1} parent=51 // pred_check_branch
          %763 = sbr.rel (%p761) target = $region76
        $region75: #{tpu_custom_call.1} parent=51 // pred_region
          %s765 = ssub.s32 128, 128
          %766 = vsyncadd %s757, %s765
          %s767 = smul.addr %s29, 2
          %s768 = sadd.s32 %s30, %s767
          %s769 = smul.addr %s768, 128
          %s770 = scalar_lea.hbm %s8, %s769
          %s772 = sshll.u32 %s760, 4
          %s773 = int_to_ptr.vmem [resolvable:$true] %s772
          %775 = dma.vmem_to_hbm [thread:$0]  %s773, 128, %s770, %s757
        $region76: #{tpu_custom_call.1} parent=51 // pred_fallthru
          _
      $region52: #{tpu_custom_call.1} parent=5 // pred_fallthru
        _
      %p776 = scmp.le.s32.totalorder 2, %s20
      // Predicated region
      $region77: #{tpu_custom_call.1} parent=5 // pred_check
        %p777 = pneg %p776
      $region78: #{tpu_custom_call.1} parent=5 // pred_check_branch
        %779 = sbr.rel (%p777) target = $region80
      $region79: #{tpu_custom_call.1} parent=5 // pred_region
        %s780 = ssub.s32 %s20, 2
        // Predicated region
        $region81: #{tpu_custom_call.1} parent=79 // pred_check
          %p781 = pneg %p251
        $region82: #{tpu_custom_call.1} parent=79 // pred_check_branch
          %783 = sbr.rel (%p781) target = $region84
        $region83: #{tpu_custom_call.1} parent=79 // pred_region
          %s784 = sand.u32 %s236, 1
          %s785 = scalar_lea.sflag [#allocation4], %s784
          %s786 = sand.u32 %s236, 1
          %s787 = smul.addr %s786, 8
          %s788 = scalar_lea.vmem [#allocation11], %s787
          %789 = dma.done %s785, 128
        $region84: #{tpu_custom_call.1} parent=79 // pred_fallthru
          _
      $region80: #{tpu_custom_call.1} parent=5 // pred_fallthru
        _
    $region6: #{tpu_custom_call.1} parent=1 // loop_footer
      %s24 = sadd.s32 1, %s20
    $region7: #{tpu_custom_call.1} parent=1 // loop_footer_branch
      %19 = sbr.rel target = $region3
    $region8: #{tpu_custom_call.1} parent=1 // loop_exit
      _
    %790 = vsyncpa [#allocation3], 1
    %s791 = scalar_lea.sflag [#allocation3], 1
    %792 = vsyncpa %s791, 1
    %793 = vsyncpa [#allocation6], 1
    %794 = vsyncpa [#allocation9], 1
    %795 = vsyncpa [#allocation4], 1
    %s796 = scalar_lea.sflag [#allocation4], 1
    %797 = vsyncpa %s796, 1

</llo_original>
